<compile_context>
chip_gen: v5e
topology: v5e:2x2
jax: 0.10.0
libtpu: 0.0.40
codegen_flags: <defaults>
</compile_context>

<pallas_src>
import functools

import jax
import jax.numpy as jnp
from jax.experimental import pallas as pl
from jax.experimental.pallas import tpu as pltpu

LANE = 128
SUBLANE = 8


# ---------------------------------------------------------------------------
# Mask construction (parameter setup glue, mirrors get_mask in the torch code)
# ---------------------------------------------------------------------------
def get_mask(in_features, out_features, in_flow_features, mask_type=None):
    if mask_type == 'input':
        in_degrees = jnp.arange(in_features) % in_flow_features
    else:
        in_degrees = jnp.arange(in_features) % (in_flow_features - 1)
    if mask_type == 'output':
        out_degrees = jnp.arange(out_features) % in_flow_features - 1
    else:
        out_degrees = jnp.arange(out_features) % (in_flow_features - 1)
    # (out_features, in_features), matches torch nn.Linear weight layout
    return (out_degrees[:, None] >= in_degrees[None, :]).astype(jnp.float32)


def _round_up(n, m):
    return (n + m - 1) // m * m


def _pad2d(a, rows, cols):
    return jnp.pad(a, ((0, rows - a.shape[0]), (0, cols - a.shape[1])))


def _choose_tile_b(batch, block_b):
    """Batch tile: multiple of SUBLANE, <= block_b, and >=2 grid steps if possible."""
    b_ceil = _round_up(max(batch, 1), SUBLANE)
    tb = max(SUBLANE, (min(block_b, b_ceil) // SUBLANE) * SUBLANE)
    if b_ceil <= tb and b_ceil > SUBLANE:
        # Split so the "parallel" batch axis can shard across v7x's two TCs.
        tb = max(SUBLANE, _round_up(-(-b_ceil // 2), SUBLANE))
    return tb


# ---------------------------------------------------------------------------
# Pallas kernel: one batch tile of the full MADE direct-mode forward.
#   h = relu(x @ W1m + b1); t = relu(h @ W2m + b2)
#   [m | a] = t @ W3m_fused + b3_fused        (two 128-lane halves, one matmul)
#   u = (x - m) * exp(-a);  logdet = -sum(a, -1) as a lane-dense (1, TB) row
# Weights arrive pre-masked, transposed, zero-padded and pre-cast/rounded to
# the MXU compute dtype; biases stay f32.  Padded lanes of the a-half are
# exact zeros, so the logdet reduction over 128 lanes is exact.
# ---------------------------------------------------------------------------
def made_kernel(x_ref, w1_ref, b1_ref, w2_ref, b2_ref, w3_ref, b3_ref,
                u_ref, logdet_ref, *, d_in, d_pad, compute_dtype):
    x = x_ref[...]                                          # (TB, D) f32, unpadded

    # ---- layer 1: K = D is tiny, so do D rank-1 VPU updates instead of an
    # MXU matmul over zero-padded lanes (no padded x anywhere).  Inputs are
    # rounded through the compute dtype so products match the bf16-input /
    # f32-accumulate reference; accumulation stays in f32.
    x_r = x.astype(compute_dtype).astype(jnp.float32)       # bf16-rounded values
    h = x_r[:, 0:1] * w1_ref[0:1, :]                        # (TB,1)*(1,H_pad)
    for j in range(1, d_in):                                # d_in is static (tiny)
        h = h + x_r[:, j:j + 1] * w1_ref[j:j + 1, :]
    h = h + b1_ref[...]
    t = jnp.maximum(h, 0.0)

    # ---- layer 2: lane-aligned (TB,128)x(128,128) bf16 MXU matmul, f32 acc
    t = jnp.dot(t.astype(compute_dtype), w2_ref[...],
                preferred_element_type=jnp.float32) + b2_ref[...]
    t = jnp.maximum(t, 0.0).astype(compute_dtype)           # cast once, reuse

    # ---- layer 3: m / a fused into one (H_pad, 2*D_pad) weight -> single
    # N=256 matmul (fills the 256-wide MXU on v6e/v7x); halves start on
    # 128-lane vreg boundaries.
    out3 = jnp.dot(t, w3_ref[...],
                   preferred_element_type=jnp.float32) + b3_ref[...]
    m = out3[:, :d_in]                                      # (TB, D) real m lanes
    a = out3[:, d_pad:d_pad + d_in]                         # (TB, D) real a lanes
    a_half = out3[:, d_pad:]                                # (TB, D_pad); pads are 0

    # ---- epilogue: narrow (TB, D) store for u; logdet as one lane-dense
    # (1, TB) row.  The lane reduction is a ones-vector NT matmul so the
    # result lands transposed with exact f32 accumulation (MXU has slack).
    u_ref[...] = (x - m) * jnp.exp(-a)
    ones_row = jnp.ones((1, d_pad), jnp.float32)
    ld_row = jax.lax.dot_general(ones_row, a_half,
                                 dimension_numbers=(((1,), (1,)), ((), ())),
                                 preferred_element_type=jnp.float32)   # (1, TB)
    logdet_ref[...] = -ld_row.reshape(logdet_ref.shape)


# ---------------------------------------------------------------------------
# Wrapper: mask/transpose/pad/round parameters, batch-tile, call the kernel.
# ---------------------------------------------------------------------------
def masked_mlp_forward(x, W1, b1, M1, W2, b2, M2, W3, b3, M3, *,
                       block_b=1024, compute_dtype=jnp.bfloat16):
    B, D = x.shape
    H = W1.shape[0]
    assert W3.shape[0] == 2 * D

    D_pad = _round_up(D, LANE)
    H_pad = _round_up(H, LANE)

    # Layer 1 stays on the VPU: keep K = D unpadded, pre-round through the
    # compute dtype so the in-kernel f32 products match MXU bf16 inputs.
    w1 = _pad2d((W1 * M1).T, D, H_pad).astype(compute_dtype).astype(jnp.float32)
    b1p = _pad2d(b1[None, :], 1, H_pad)                               # f32 biases

    w2 = _pad2d((W2 * M2).T, H_pad, H_pad).astype(compute_dtype)      # (H_pad,H_pad)
    b2p = _pad2d(b2[None, :], 1, H_pad)

    # Fused third layer: [m-half | a-half], each zero-padded to 128 lanes.
    w3_masked = W3 * M3                                               # (2D, H)
    w3m = _pad2d(w3_masked[:D].T, H_pad, D_pad)
    w3a = _pad2d(w3_masked[D:].T, H_pad, D_pad)
    w3 = jnp.concatenate([w3m, w3a], axis=1).astype(compute_dtype)    # (H_pad, 2*D_pad)
    b3p = jnp.concatenate([_pad2d(b3[None, :D], 1, D_pad),
                           _pad2d(b3[None, D:], 1, D_pad)], axis=1)   # (1, 2*D_pad)

    TB = _choose_tile_b(B, block_b)
    B_pad = _round_up(B, TB)
    n_tiles = B_pad // TB
    x_in = x if B_pad == B else jnp.pad(x, ((0, B_pad - B), (0, 0)))  # rows only

    batch_spec = pl.BlockSpec((TB, D), lambda i: (i, 0))
    # Constant index maps keep weights/biases VMEM-resident after step 0.
    # (pl.Buffered(1) on these would shave a little VMEM; left default.)
    const_spec = lambda shape: pl.BlockSpec(shape, lambda i: (0, 0))

    u_out, ld_tiles = pl.pallas_call(
        functools.partial(made_kernel, d_in=D, d_pad=D_pad,
                          compute_dtype=compute_dtype),
        out_shape=(jax.ShapeDtypeStruct((B_pad, D), jnp.float32),
                   jax.ShapeDtypeStruct((n_tiles, 1, TB), jnp.float32)),
        grid=(n_tiles,),
        in_specs=[batch_spec,
                  const_spec((D, H_pad)), const_spec((1, H_pad)),
                  const_spec((H_pad, H_pad)), const_spec((1, H_pad)),
                  const_spec((H_pad, 2 * D_pad)), const_spec((1, 2 * D_pad))],
        out_specs=(pl.BlockSpec((TB, D), lambda i: (i, 0)),
                   pl.BlockSpec((1, 1, TB), lambda i: (i, 0, 0))),
        compiler_params=pltpu.CompilerParams(
            dimension_semantics=("parallel",)),      # megacore-shardable on v7x
    )(x_in, w1, b1p, w2, b2p, w3, b3p)

    return u_out[:B], ld_tiles.reshape(B_pad)[:B]


# ---------------------------------------------------------------------------
# Pure-JAX reference (torch-module semantics; compute_dtype lets us match the
# MXU's bf16-input / f32-accumulate behavior for a tight check).
# ---------------------------------------------------------------------------
def made_reference(x, W1, b1, M1, W2, b2, M2, W3, b3, M3,
                   compute_dtype=jnp.float32):
    def mm(act, w_t):
        return jnp.dot(act.astype(compute_dtype), w_t.astype(compute_dtype),
                       preferred_element_type=jnp.float32)

    h = mm(x, (W1 * M1).T) + b1
    t = jnp.maximum(h, 0.0)
    t = mm(t, (W2 * M2).T) + b2
    t = jnp.maximum(t, 0.0)
    out = mm(t, (W3 * M3).T) + b3
    D = x.shape[1]
    m, a = out[:, :D], out[:, D:]
    u = (x - m) * jnp.exp(-a)
    return u, -a.sum(-1)


if __name__ == "__main__":
    B = 512          # batch (TB=256 -> grid=(2,), both v7x TCs usable)
    D = 4            # num_inputs
    H = 32           # num_hidden

    key = jax.random.PRNGKey(0)
    kx, k1, kb1, k2, kb2, k3, kb3 = jax.random.split(key, 7)

    x = jax.random.normal(kx, (B, D), dtype=jnp.float32)

    # nn.Linear-style weights (out, in) + biases, deterministic init
    W1 = 0.2 * jax.random.normal(k1, (H, D), dtype=jnp.float32)
    b1 = 0.1 * jax.random.normal(kb1, (H,), dtype=jnp.float32)
    W2 = 0.2 * jax.random.normal(k2, (H, H), dtype=jnp.float32)
    b2 = 0.1 * jax.random.normal(kb2, (H,), dtype=jnp.float32)
    W3 = 0.2 * jax.random.normal(k3, (2 * D, H), dtype=jnp.float32)
    b3 = 0.1 * jax.random.normal(kb3, (2 * D,), dtype=jnp.float32)

    # MADE autoregressive masks
    M1 = get_mask(D, H, D, mask_type='input')        # (H, D)
    M2 = get_mask(H, H, D)                           # (H, H)
    M3 = get_mask(H, 2 * D, D, mask_type='output')   # (2D, H)

    u, logdet = masked_mlp_forward(x, W1, b1, M1, W2, b2, M2, W3, b3, M3,
                                   compute_dtype=jnp.bfloat16)
    jax.block_until_ready((u, logdet))

    assert u.shape == (B, D) and logdet.shape == (B,)

    # Tight check vs a reference with the same bf16 MXU-input rounding
    u_bf, ld_bf = made_reference(x, W1, b1, M1, W2, b2, M2, W3, b3, M3,
                                 compute_dtype=jnp.bfloat16)
    assert jnp.allclose(u, u_bf, atol=5e-3, rtol=5e-3)
    assert jnp.allclose(logdet, ld_bf, atol=5e-3, rtol=5e-3)

    # Loose check vs the full-f32 torch-semantics reference
    u_f32, ld_f32 = made_reference(x, W1, b1, M1, W2, b2, M2, W3, b3, M3)
    assert jnp.allclose(u, u_f32, atol=5e-2, rtol=5e-2)
    assert jnp.allclose(logdet, ld_f32, atol=5e-2, rtol=5e-2)

    print("KERNEL_OK")
</pallas_src>

<mosaic_0001>
module attributes {stable_mosaic.version = 11 : i64} {
  func.func @made_kernel(%arg0: i32, %arg1: memref<256x4xf32, #tpu.memory_space<vmem>>, %arg2: memref<4x128xf32, #tpu.memory_space<vmem>>, %arg3: memref<1x128xf32, #tpu.memory_space<vmem>>, %arg4: memref<128x128xbf16, #tpu.memory_space<vmem>>, %arg5: memref<1x128xf32, #tpu.memory_space<vmem>>, %arg6: memref<128x256xbf16, #tpu.memory_space<vmem>>, %arg7: memref<1x256xf32, #tpu.memory_space<vmem>>, %arg8: memref<256x4xf32, #tpu.memory_space<vmem>>, %arg9: memref<1x1x256xf32, #tpu.memory_space<vmem>>) attributes {dimension_semantics = [#tpu.dimension_semantics<parallel>], iteration_bounds = array<i64: 2>, scalar_prefetch = 0 : i64, scratch_operands = 0 : i64, tpu.core_type = #tpu.core_type<tc>, window_params = [{transform_indices = @transform_0, window_bounds = array<i64: 256, 4>}, {pipeline_mode = #tpu.pipeline_mode<synchronous>, transform_indices = @transform_1, window_bounds = array<i64: 4, 128>}, {pipeline_mode = #tpu.pipeline_mode<synchronous>, transform_indices = @transform_2, window_bounds = array<i64: 1, 128>}, {pipeline_mode = #tpu.pipeline_mode<synchronous>, transform_indices = @transform_3, window_bounds = array<i64: 128, 128>}, {pipeline_mode = #tpu.pipeline_mode<synchronous>, transform_indices = @transform_4, window_bounds = array<i64: 1, 128>}, {pipeline_mode = #tpu.pipeline_mode<synchronous>, transform_indices = @transform_5, window_bounds = array<i64: 128, 256>}, {pipeline_mode = #tpu.pipeline_mode<synchronous>, transform_indices = @transform_6, window_bounds = array<i64: 1, 256>}, {transform_indices = @transform_7, window_bounds = array<i64: 256, 4>}, {transform_indices = @transform_8, window_bounds = array<i64: 1, 1, 256>}]} {
    %c0 = arith.constant 0 : index
    %c0_0 = arith.constant 0 : index
    %0 = vector.load %arg1[%c0, %c0_0] : memref<256x4xf32, #tpu.memory_space<vmem>>, vector<256x4xf32>
    %1 = arith.truncf %0 : vector<256x4xf32> to vector<256x4xbf16>
    %2 = arith.extf %1 : vector<256x4xbf16> to vector<256x4xf32>
    %3 = vector.extract_strided_slice %2 {offsets = [0, 0], sizes = [256, 1], strides = [1, 1]} : vector<256x4xf32> to vector<256x1xf32>
    %c0_1 = arith.constant 0 : index
    %c0_2 = arith.constant 0 : index
    %4 = vector.load %arg2[%c0_1, %c0_2] : memref<4x128xf32, #tpu.memory_space<vmem>>, vector<1x128xf32>
    %5 = vector.broadcast %3 : vector<256x1xf32> to vector<256x128xf32>
    %6 = vector.broadcast %4 : vector<1x128xf32> to vector<256x128xf32>
    %7 = arith.mulf %5, %6 : vector<256x128xf32>
    %8 = vector.extract_strided_slice %2 {offsets = [0, 1], sizes = [256, 1], strides = [1, 1]} : vector<256x4xf32> to vector<256x1xf32>
    %c1 = arith.constant 1 : index
    %c0_3 = arith.constant 0 : index
    %9 = vector.load %arg2[%c1, %c0_3] : memref<4x128xf32, #tpu.memory_space<vmem>>, vector<1x128xf32>
    %10 = vector.broadcast %8 : vector<256x1xf32> to vector<256x128xf32>
    %11 = vector.broadcast %9 : vector<1x128xf32> to vector<256x128xf32>
    %12 = arith.mulf %10, %11 : vector<256x128xf32>
    %13 = arith.addf %7, %12 : vector<256x128xf32>
    %14 = vector.extract_strided_slice %2 {offsets = [0, 2], sizes = [256, 1], strides = [1, 1]} : vector<256x4xf32> to vector<256x1xf32>
    %c2 = arith.constant 2 : index
    %c0_4 = arith.constant 0 : index
    %15 = vector.load %arg2[%c2, %c0_4] : memref<4x128xf32, #tpu.memory_space<vmem>>, vector<1x128xf32>
    %16 = vector.broadcast %14 : vector<256x1xf32> to vector<256x128xf32>
    %17 = vector.broadcast %15 : vector<1x128xf32> to vector<256x128xf32>
    %18 = arith.mulf %16, %17 : vector<256x128xf32>
    %19 = arith.addf %13, %18 : vector<256x128xf32>
    %20 = vector.extract_strided_slice %2 {offsets = [0, 3], sizes = [256, 1], strides = [1, 1]} : vector<256x4xf32> to vector<256x1xf32>
    %c3 = arith.constant 3 : index
    %c0_5 = arith.constant 0 : index
    %21 = vector.load %arg2[%c3, %c0_5] : memref<4x128xf32, #tpu.memory_space<vmem>>, vector<1x128xf32>
    %22 = vector.broadcast %20 : vector<256x1xf32> to vector<256x128xf32>
    %23 = vector.broadcast %21 : vector<1x128xf32> to vector<256x128xf32>
    %24 = arith.mulf %22, %23 : vector<256x128xf32>
    %25 = arith.addf %19, %24 : vector<256x128xf32>
    %c0_6 = arith.constant 0 : index
    %c0_7 = arith.constant 0 : index
    %26 = vector.load %arg3[%c0_6, %c0_7] : memref<1x128xf32, #tpu.memory_space<vmem>>, vector<1x128xf32>
    %27 = vector.broadcast %26 : vector<1x128xf32> to vector<256x128xf32>
    %28 = arith.addf %25, %27 : vector<256x128xf32>
    %cst = arith.constant 0.000000e+00 : f32
    %29 = vector.broadcast %cst : f32 to vector<256x128xf32>
    %30 = arith.maximumf %28, %29 : vector<256x128xf32>
    %31 = arith.truncf %30 : vector<256x128xf32> to vector<256x128xbf16>
    %c0_8 = arith.constant 0 : index
    %c0_9 = arith.constant 0 : index
    %32 = vector.load %arg4[%c0_8, %c0_9] : memref<128x128xbf16, #tpu.memory_space<vmem>>, vector<128x128xbf16>
    %cst_10 = arith.constant dense<0.000000e+00> : vector<256x128xf32>
    %33 = tpu.matmul %31, %32, %cst_10 {dimension_numbers = #tpu.dot_dimension_numbers<[1], [0], [0], [1], [0, 0, 1, 1], [], []>} : vector<256x128xbf16>, vector<128x128xbf16>, vector<256x128xf32> -> vector<256x128xf32>
    %c0_11 = arith.constant 0 : index
    %c0_12 = arith.constant 0 : index
    %34 = vector.load %arg5[%c0_11, %c0_12] : memref<1x128xf32, #tpu.memory_space<vmem>>, vector<1x128xf32>
    %35 = vector.broadcast %34 : vector<1x128xf32> to vector<256x128xf32>
    %36 = arith.addf %33, %35 : vector<256x128xf32>
    %cst_13 = arith.constant 0.000000e+00 : f32
    %37 = vector.broadcast %cst_13 : f32 to vector<256x128xf32>
    %38 = arith.maximumf %36, %37 : vector<256x128xf32>
    %39 = arith.truncf %38 : vector<256x128xf32> to vector<256x128xbf16>
    %c0_14 = arith.constant 0 : index
    %c0_15 = arith.constant 0 : index
    %40 = vector.load %arg6[%c0_14, %c0_15] : memref<128x256xbf16, #tpu.memory_space<vmem>>, vector<128x256xbf16>
    %cst_16 = arith.constant dense<0.000000e+00> : vector<256x256xf32>
    %41 = tpu.matmul %39, %40, %cst_16 {dimension_numbers = #tpu.dot_dimension_numbers<[1], [0], [0], [1], [0, 0, 1, 1], [], []>} : vector<256x128xbf16>, vector<128x256xbf16>, vector<256x256xf32> -> vector<256x256xf32>
    %c0_17 = arith.constant 0 : index
    %c0_18 = arith.constant 0 : index
    %42 = vector.load %arg7[%c0_17, %c0_18] : memref<1x256xf32, #tpu.memory_space<vmem>>, vector<1x256xf32>
    %43 = vector.broadcast %42 : vector<1x256xf32> to vector<256x256xf32>
    %44 = arith.addf %41, %43 : vector<256x256xf32>
    %45 = vector.extract_strided_slice %44 {offsets = [0, 0], sizes = [256, 4], strides = [1, 1]} : vector<256x256xf32> to vector<256x4xf32>
    %46 = vector.extract_strided_slice %44 {offsets = [0, 128], sizes = [256, 4], strides = [1, 1]} : vector<256x256xf32> to vector<256x4xf32>
    %47 = vector.extract_strided_slice %44 {offsets = [0, 128], sizes = [256, 128], strides = [1, 1]} : vector<256x256xf32> to vector<256x128xf32>
    %48 = arith.subf %0, %45 : vector<256x4xf32>
    %cst_19 = arith.constant 0.000000e+00 : f32
    %49 = vector.broadcast %cst_19 : f32 to vector<256x4xf32>
    %50 = arith.subf %49, %46 : vector<256x4xf32>
    %51 = math.exp %50 : vector<256x4xf32>
    %52 = arith.mulf %48, %51 : vector<256x4xf32>
    %c0_20 = arith.constant 0 : index
    %c0_21 = arith.constant 0 : index
    %53 = vector.load %arg8[%c0_20, %c0_21] : memref<256x4xf32, #tpu.memory_space<vmem>>, vector<256x4xf32>
    tpu.vector_store %arg8[%c0_20, %c0_21], %52 {strides = array<i32>} : memref<256x4xf32, #tpu.memory_space<vmem>>, vector<256x4xf32>,
    %cst_22 = arith.constant 1.000000e+00 : f32
    %54 = vector.broadcast %cst_22 : f32 to vector<1x128xf32>
    %cst_23 = arith.constant dense<0.000000e+00> : vector<1x256xf32>
    %55 = tpu.matmul %54, %47, %cst_23 {dimension_numbers = #tpu.dot_dimension_numbers<[1], [1], [0], [0], [0, 0, 1, 0], [], []>} : vector<1x128xf32>, vector<256x128xf32>, vector<1x256xf32> -> vector<1x256xf32>
    %56 = vector.shape_cast %55 : vector<1x256xf32> to vector<1x1x256xf32>
    %cst_24 = arith.constant 0.000000e+00 : f32
    %57 = vector.broadcast %cst_24 : f32 to vector<1x1x256xf32>
    %58 = arith.subf %57, %56 : vector<1x1x256xf32>
    %c0_25 = arith.constant 0 : index
    %c0_26 = arith.constant 0 : index
    %c0_27 = arith.constant 0 : index
    %59 = vector.load %arg9[%c0_25, %c0_26, %c0_27] : memref<1x1x256xf32, #tpu.memory_space<vmem>>, vector<1x1x256xf32>
    tpu.vector_store %arg9[%c0_25, %c0_26, %c0_27], %58 {strides = array<i32>} : memref<1x1x256xf32, #tpu.memory_space<vmem>>, vector<1x1x256xf32>,
    return
  }
  func.func @transform_0(%arg0: i32) -> (i32, i32) {
    %c0_i32 = arith.constant 0 : i32
    %c0_i32_0 = arith.constant 0 : i32
    return %arg0, %c0_i32 : i32, i32
  }
  func.func @transform_1(%arg0: i32) -> (i32, i32) {
    %c0_i32 = arith.constant 0 : i32
    %c0_i32_0 = arith.constant 0 : i32
    %c0_i32_1 = arith.constant 0 : i32
    return %c0_i32, %c0_i32_0 : i32, i32
  }
  func.func @transform_2(%arg0: i32) -> (i32, i32) {
    %c0_i32 = arith.constant 0 : i32
    %c0_i32_0 = arith.constant 0 : i32
    %c0_i32_1 = arith.constant 0 : i32
    return %c0_i32, %c0_i32_0 : i32, i32
  }
  func.func @transform_3(%arg0: i32) -> (i32, i32) {
    %c0_i32 = arith.constant 0 : i32
    %c0_i32_0 = arith.constant 0 : i32
    %c0_i32_1 = arith.constant 0 : i32
    return %c0_i32, %c0_i32_0 : i32, i32
  }
  func.func @transform_4(%arg0: i32) -> (i32, i32) {
    %c0_i32 = arith.constant 0 : i32
    %c0_i32_0 = arith.constant 0 : i32
    %c0_i32_1 = arith.constant 0 : i32
    return %c0_i32, %c0_i32_0 : i32, i32
  }
  func.func @transform_5(%arg0: i32) -> (i32, i32) {
    %c0_i32 = arith.constant 0 : i32
    %c0_i32_0 = arith.constant 0 : i32
    %c0_i32_1 = arith.constant 0 : i32
    return %c0_i32, %c0_i32_0 : i32, i32
  }
  func.func @transform_6(%arg0: i32) -> (i32, i32) {
    %c0_i32 = arith.constant 0 : i32
    %c0_i32_0 = arith.constant 0 : i32
    %c0_i32_1 = arith.constant 0 : i32
    return %c0_i32, %c0_i32_0 : i32, i32
  }
  func.func @transform_7(%arg0: i32) -> (i32, i32) {
    %c0_i32 = arith.constant 0 : i32
    %c0_i32_0 = arith.constant 0 : i32
    return %arg0, %c0_i32 : i32, i32
  }
  func.func @transform_8(%arg0: i32) -> (i32, i32, i32) {
    %c0_i32 = arith.constant 0 : i32
    %c0_i32_0 = arith.constant 0 : i32
    %c0_i32_1 = arith.constant 0 : i32
    return %arg0, %c0_i32, %c0_i32_0 : i32, i32, i32
  }
}

</mosaic_0001>

<llo_original>
// kernel: tpu_custom_call.1
$region0: #{tpu_custom_call.1}
  #allocation0 [shape = 'u32[]', space=smem, size = 0x4, offset = 0x4, fixed_abs, tag = 'smem constant byte address 0x4 - core index']
  #allocation1 [shape = 'u32[72,128]{1,0:T(1,128)}', space=vmem, size = 0x9000, scoped, tag = 'internal scratch']
  %s0 = inlined_call_operand.vmem [shape: f32[512,4], index: 0, kind: input, shape index: {}]
  %s1 = inlined_call_operand.vmem [shape: f32[4,128], index: 1, kind: input, shape index: {}]
  %s2 = inlined_call_operand.vmem [shape: f32[1,128], index: 2, kind: input, shape index: {}]
  %s3 = inlined_call_operand.vmem [shape: bf16[128,128], index: 3, kind: input, shape index: {}]
  %s4 = inlined_call_operand.vmem [shape: f32[1,128], index: 4, kind: input, shape index: {}]
  %s5 = inlined_call_operand.vmem [shape: bf16[128,256], index: 5, kind: input, shape index: {}]
  %s6 = inlined_call_operand.vmem [shape: f32[1,256], index: 6, kind: input, shape index: {}]
  %s7 = inlined_call_operand.vmem [shape: f32[512,4], index: 7, kind: output, shape index: {0}]
  %s8 = inlined_call_operand.hbm [shape: f32[2,1,256], index: 8, kind: output, shape index: {1}]
  %9 = xla_tuple %s7, %s8
  %s10 = sld [smem:[#allocation0]]
  $region69: #{tpu_custom_call.1} parent=0
    _
  %s12 = ssub.s32 1, %s10
  %s13 = scalar_select 0, %s12, %s10
  $region1: #{tpu_custom_call.1} parent=0
    #allocation2 [shape = 'u8[2048]{0}', space=vmem, size = 0x800, scoped, tag = 'output window, operand 1']
    #allocation3 [shape = 's32[2]{0}', space=sflag, size = 0x8, scoped, tag = 'scoped memory for tpu_custom_call.1']
    %14 = vsyncpa [#allocation3], 0
    %s15 = scalar_lea.sflag [#allocation3], 1
    %16 = vsyncpa %s15, 0
    loop: start=0, step=1, limit=4
    $region2: #{tpu_custom_call.1} parent=1 // loop_pre_header
      _
    $region3: #{tpu_custom_call.1} parent=1 // loop_header
      %s18 = sphi 0, %s22
      %p19 = scmp.ge.s32.totalorder %s18, 4
      %s28 = sphi 0, %s30
      %s31 = sphi 0, %s28
      %s32 = sphi 0, %s31
      %s48 = sphi 0, %s32
      %s52 = sphi 0, %s52
      %s54 = sphi 0, %s52
      %s55 = sphi 0, %s54
      %s69 = sphi 0, %s55
      %s73 = sphi 0, %s73
      %s75 = sphi 0, %s73
      %s76 = sphi 0, %s75
      %s90 = sphi 0, %s76
      %s94 = sphi 0, %s94
      %s96 = sphi 0, %s94
      %s97 = sphi 0, %s96
      %s111 = sphi 0, %s97
      %s115 = sphi 0, %s115
      %s117 = sphi 0, %s115
      %s118 = sphi 0, %s117
      %s132 = sphi 0, %s118
      %s136 = sphi 0, %s136
      %s138 = sphi 0, %s136
      %s139 = sphi 0, %s138
      %s153 = sphi 0, %s139
      %s157 = sphi 0, %s157
      %s159 = sphi 0, %s157
      %s160 = sphi 0, %s159
      %s174 = sphi 0, %s160
      %s180 = sphi 0, %s182
      %s183 = sphi 0, %s180
      %s184 = sphi 0, %s183
      %s200 = sphi 0, %s184
      %s206 = sphi 0, %s208
      %s209 = sphi 0, %s206
      %s210 = sphi 0, %s209
      %s226 = sphi 0, %s210
    $region4: #{tpu_custom_call.1} parent=1 // loop_header_branch
      %21 = sbr.rel (%p19) target = $region8
    $region5: #{tpu_custom_call.1} parent=1 // loop_body
      %s23 = ssub.s32 %s18, 1
      %s24 = ssub.s32 %s18, 2
      %s25 = sadd.s32 %s18, 1
      %s26 = ssub.s32 %s18, %s25
      %p27 = scmp.eq.s32.totalorder %s26, 0
      %s29 = sadd.s32 %s28, 1
      %s30 = scalar_select %p27, %s28, %s29
      %p33 = pneg %p27
      %p34 = scmp.eq.s32.totalorder %s18, 1
      %p35 = por %p33, %p34
      %p36 = scmp.ne.s32.totalorder %s28, %s31
      %p37 = scmp.eq.s32.totalorder %s18, 0
      %p38 = por %p36, %p37
      %p39 = scmp.ne.s32.totalorder %s28, %s31
      %p40 = scmp.eq.s32.totalorder %s23, 1
      %p41 = por %p39, %p40
      %p42 = scmp.ne.s32.totalorder %s31, %s32
      %p43 = scmp.eq.s32.totalorder %s23, 0
      %p44 = por %p42, %p43
      %p45 = scmp.ne.s32.totalorder %s31, %s32
      %p46 = scmp.eq.s32.totalorder %s24, 1
      %p47 = por %p45, %p46
      %p49 = scmp.ne.s32.totalorder %s32, %s48
      %p50 = scmp.eq.s32.totalorder %s24, 0
      %p51 = por %p49, %p50
      %s53 = sadd.s32 %s52, 1
      %p56 = scmp.eq.s32.totalorder %s18, 1
      %p57 = scmp.ne.s32.totalorder %s52, %s54
      %p58 = scmp.eq.s32.totalorder %s18, 0
      %p59 = por %p57, %p58
      %p60 = scmp.ne.s32.totalorder %s52, %s54
      %p61 = scmp.eq.s32.totalorder %s23, 1
      %p62 = por %p60, %p61
      %p63 = scmp.ne.s32.totalorder %s54, %s55
      %p64 = scmp.eq.s32.totalorder %s23, 0
      %p65 = por %p63, %p64
      %p66 = scmp.ne.s32.totalorder %s54, %s55
      %p67 = scmp.eq.s32.totalorder %s24, 1
      %p68 = por %p66, %p67
      %p70 = scmp.ne.s32.totalorder %s55, %s69
      %p71 = scmp.eq.s32.totalorder %s24, 0
      %p72 = por %p70, %p71
      %s74 = sadd.s32 %s73, 1
      %p77 = scmp.eq.s32.totalorder %s18, 1
      %p78 = scmp.ne.s32.totalorder %s73, %s75
      %p79 = scmp.eq.s32.totalorder %s18, 0
      %p80 = por %p78, %p79
      %p81 = scmp.ne.s32.totalorder %s73, %s75
      %p82 = scmp.eq.s32.totalorder %s23, 1
      %p83 = por %p81, %p82
      %p84 = scmp.ne.s32.totalorder %s75, %s76
      %p85 = scmp.eq.s32.totalorder %s23, 0
      %p86 = por %p84, %p85
      %p87 = scmp.ne.s32.totalorder %s75, %s76
      %p88 = scmp.eq.s32.totalorder %s24, 1
      %p89 = por %p87, %p88
      %p91 = scmp.ne.s32.totalorder %s76, %s90
      %p92 = scmp.eq.s32.totalorder %s24, 0
      %p93 = por %p91, %p92
      %s95 = sadd.s32 %s94, 1
      %p98 = scmp.eq.s32.totalorder %s18, 1
      %p99 = scmp.ne.s32.totalorder %s94, %s96
      %p100 = scmp.eq.s32.totalorder %s18, 0
      %p101 = por %p99, %p100
      %p102 = scmp.ne.s32.totalorder %s94, %s96
      %p103 = scmp.eq.s32.totalorder %s23, 1
      %p104 = por %p102, %p103
      %p105 = scmp.ne.s32.totalorder %s96, %s97
      %p106 = scmp.eq.s32.totalorder %s23, 0
      %p107 = por %p105, %p106
      %p108 = scmp.ne.s32.totalorder %s96, %s97
      %p109 = scmp.eq.s32.totalorder %s24, 1
      %p110 = por %p108, %p109
      %p112 = scmp.ne.s32.totalorder %s97, %s111
      %p113 = scmp.eq.s32.totalorder %s24, 0
      %p114 = por %p112, %p113
      %s116 = sadd.s32 %s115, 1
      %p119 = scmp.eq.s32.totalorder %s18, 1
      %p120 = scmp.ne.s32.totalorder %s115, %s117
      %p121 = scmp.eq.s32.totalorder %s18, 0
      %p122 = por %p120, %p121
      %p123 = scmp.ne.s32.totalorder %s115, %s117
      %p124 = scmp.eq.s32.totalorder %s23, 1
      %p125 = por %p123, %p124
      %p126 = scmp.ne.s32.totalorder %s117, %s118
      %p127 = scmp.eq.s32.totalorder %s23, 0
      %p128 = por %p126, %p127
      %p129 = scmp.ne.s32.totalorder %s117, %s118
      %p130 = scmp.eq.s32.totalorder %s24, 1
      %p131 = por %p129, %p130
      %p133 = scmp.ne.s32.totalorder %s118, %s132
      %p134 = scmp.eq.s32.totalorder %s24, 0
      %p135 = por %p133, %p134
      %s137 = sadd.s32 %s136, 1
      %p140 = scmp.eq.s32.totalorder %s18, 1
      %p141 = scmp.ne.s32.totalorder %s136, %s138
      %p142 = scmp.eq.s32.totalorder %s18, 0
      %p143 = por %p141, %p142
      %p144 = scmp.ne.s32.totalorder %s136, %s138
      %p145 = scmp.eq.s32.totalorder %s23, 1
      %p146 = por %p144, %p145
      %p147 = scmp.ne.s32.totalorder %s138, %s139
      %p148 = scmp.eq.s32.totalorder %s23, 0
      %p149 = por %p147, %p148
      %p150 = scmp.ne.s32.totalorder %s138, %s139
      %p151 = scmp.eq.s32.totalorder %s24, 1
      %p152 = por %p150, %p151
      %p154 = scmp.ne.s32.totalorder %s139, %s153
      %p155 = scmp.eq.s32.totalorder %s24, 0
      %p156 = por %p154, %p155
      %s158 = sadd.s32 %s157, 1
      %p161 = scmp.eq.s32.totalorder %s18, 1
      %p162 = scmp.ne.s32.totalorder %s157, %s159
      %p163 = scmp.eq.s32.totalorder %s18, 0
      %p164 = por %p162, %p163
      %p165 = scmp.ne.s32.totalorder %s157, %s159
      %p166 = scmp.eq.s32.totalorder %s23, 1
      %p167 = por %p165, %p166
      %p168 = scmp.ne.s32.totalorder %s159, %s160
      %p169 = scmp.eq.s32.totalorder %s23, 0
      %p170 = por %p168, %p169
      %p171 = scmp.ne.s32.totalorder %s159, %s160
      %p172 = scmp.eq.s32.totalorder %s24, 1
      %p173 = por %p171, %p172
      %p175 = scmp.ne.s32.totalorder %s160, %s174
      %p176 = scmp.eq.s32.totalorder %s24, 0
      %p177 = por %p175, %p176
      %s178 = ssub.s32 %s18, %s25
      %p179 = scmp.eq.s32.totalorder %s178, 0
      %s181 = sadd.s32 %s180, 1
      %s182 = scalar_select %p179, %s180, %s181
      %p185 = pneg %p179
      %p186 = scmp.eq.s32.totalorder %s18, 1
      %p187 = por %p185, %p186
      %p188 = scmp.ne.s32.totalorder %s180, %s183
      %p189 = scmp.eq.s32.totalorder %s18, 0
      %p190 = por %p188, %p189
      %p191 = scmp.ne.s32.totalorder %s180, %s183
      %p192 = scmp.eq.s32.totalorder %s23, 1
      %p193 = por %p191, %p192
      %p194 = scmp.ne.s32.totalorder %s183, %s184
      %p195 = scmp.eq.s32.totalorder %s23, 0
      %p196 = por %p194, %p195
      %p197 = scmp.ne.s32.totalorder %s183, %s184
      %p198 = scmp.eq.s32.totalorder %s24, 1
      %p199 = por %p197, %p198
      %p201 = scmp.ne.s32.totalorder %s184, %s200
      %p202 = scmp.eq.s32.totalorder %s24, 0
      %p203 = por %p201, %p202
      %s204 = ssub.s32 %s18, %s25
      %p205 = scmp.eq.s32.totalorder %s204, 0
      %s207 = sadd.s32 %s206, 1
      %s208 = scalar_select %p205, %s206, %s207
      %p211 = pneg %p205
      %p212 = scmp.eq.s32.totalorder %s18, 1
      %p213 = por %p211, %p212
      %p214 = scmp.ne.s32.totalorder %s206, %s209
      %p215 = scmp.eq.s32.totalorder %s18, 0
      %p216 = por %p214, %p215
      %p217 = scmp.ne.s32.totalorder %s206, %s209
      %p218 = scmp.eq.s32.totalorder %s23, 1
      %p219 = por %p217, %p218
      %p220 = scmp.ne.s32.totalorder %s209, %s210
      %p221 = scmp.eq.s32.totalorder %s23, 0
      %p222 = por %p220, %p221
      %p223 = scmp.ne.s32.totalorder %s209, %s210
      %p224 = scmp.eq.s32.totalorder %s24, 1
      %p225 = por %p223, %p224
      %p227 = scmp.ne.s32.totalorder %s210, %s226
      %p228 = scmp.eq.s32.totalorder %s24, 0
      %p229 = por %p227, %p228
      %p230 = scmp.le.s32.totalorder 1, %s18
      %p231 = scmp.lt.s32.totalorder %s18, 3
      %p232 = pnand %p230, %p231
      %p233 = pneg %p232
      // Predicated region
      $region9: #{tpu_custom_call.1} parent=5 // pred_check
        _
      $region10: #{tpu_custom_call.1} parent=5 // pred_check_branch
        %235 = sbr.rel (%p232) target = $region12
      $region11: #{tpu_custom_call.1} parent=5 // pred_region
        %s236 = ssub.s32 %s18, 1
        // Predicated region
        $region13: #{tpu_custom_call.1} parent=11 // pred_check
          %p237 = pneg %p65
        $region14: #{tpu_custom_call.1} parent=11 // pred_check_branch
          %239 = sbr.rel (%p237) target = $region16
        $region15: #{tpu_custom_call.1} parent=11 // pred_region
          _
        $region16: #{tpu_custom_call.1} parent=11 // pred_fallthru
          _
        // Predicated region
        $region17: #{tpu_custom_call.1} parent=11 // pred_check
          %p240 = pneg %p86
        $region18: #{tpu_custom_call.1} parent=11 // pred_check_branch
          %242 = sbr.rel (%p240) target = $region20
        $region19: #{tpu_custom_call.1} parent=11 // pred_region
          _
        $region20: #{tpu_custom_call.1} parent=11 // pred_fallthru
          _
        // Predicated region
        $region21: #{tpu_custom_call.1} parent=11 // pred_check
          %p243 = pneg %p107
        $region22: #{tpu_custom_call.1} parent=11 // pred_check_branch
          %245 = sbr.rel (%p243) target = $region24
        $region23: #{tpu_custom_call.1} parent=11 // pred_region
          _
        $region24: #{tpu_custom_call.1} parent=11 // pred_fallthru
          _
        // Predicated region
        $region25: #{tpu_custom_call.1} parent=11 // pred_check
          %p246 = pneg %p128
        $region26: #{tpu_custom_call.1} parent=11 // pred_check_branch
          %248 = sbr.rel (%p246) target = $region28
        $region27: #{tpu_custom_call.1} parent=11 // pred_region
          _
        $region28: #{tpu_custom_call.1} parent=11 // pred_fallthru
          _
        // Predicated region
        $region29: #{tpu_custom_call.1} parent=11 // pred_check
          %p249 = pneg %p149
        $region30: #{tpu_custom_call.1} parent=11 // pred_check_branch
          %251 = sbr.rel (%p249) target = $region32
        $region31: #{tpu_custom_call.1} parent=11 // pred_region
          _
        $region32: #{tpu_custom_call.1} parent=11 // pred_fallthru
          _
        // Predicated region
        $region33: #{tpu_custom_call.1} parent=11 // pred_check
          %p252 = pneg %p170
        $region34: #{tpu_custom_call.1} parent=11 // pred_check_branch
          %254 = sbr.rel (%p252) target = $region36
        $region35: #{tpu_custom_call.1} parent=11 // pred_region
          _
        $region36: #{tpu_custom_call.1} parent=11 // pred_fallthru
          _
      $region12: #{tpu_custom_call.1} parent=5 // pred_fallthru
        _
      %p255 = scmp.lt.s32.totalorder %s18, 2
      // Predicated region
      $region37: #{tpu_custom_call.1} parent=5 // pred_check
        %p256 = pneg %p255
      $region38: #{tpu_custom_call.1} parent=5 // pred_check_branch
        %258 = sbr.rel (%p256) target = $region40
      $region39: #{tpu_custom_call.1} parent=5 // pred_region
        // Predicated region
        $region41: #{tpu_custom_call.1} parent=39 // pred_check
          %p259 = pneg %p38
        $region42: #{tpu_custom_call.1} parent=39 // pred_check_branch
          %261 = sbr.rel (%p259) target = $region44
        $region43: #{tpu_custom_call.1} parent=39 // pred_region
          %s262 = smul.u32 32, %s18
          %p263 = scmp.lt.s32.totalorder %s262, 63
          %s264 = scalar_select %p263, %s262, 63
          %s265 = smul.addr %s264, 8
          %s266 = scalar_lea.vmem %s0, %s265
          %s267 = smul.u32 32, %s18
        $region44: #{tpu_custom_call.1} parent=39 // pred_fallthru
          _
      $region40: #{tpu_custom_call.1} parent=5 // pred_fallthru
        _
      %p268 = scmp.le.s32.totalorder 1, %s18
      %p269 = scmp.lt.s32.totalorder %s18, 3
      %p270 = pnand %p268, %p269
      %p271 = pneg %p270
      // Predicated region
      $region45: #{tpu_custom_call.1} parent=5 // pred_check
        _
      $region46: #{tpu_custom_call.1} parent=5 // pred_check_branch
        %273 = sbr.rel (%p270) target = $region48
      $region47: #{tpu_custom_call.1} parent=5 // pred_region
        %s274 = ssub.s32 %s18, 1
        %s275 = smul.u32 32, %s23
        %p276 = scmp.lt.s32.totalorder %s275, 63
        %s277 = scalar_select %p276, %s275, 63
        %s278 = smul.addr %s277, 8
        %s279 = scalar_lea.vmem %s0, %s278
        %p280 = pneg %p44
        %p281 = pneg %p41
        %p282 = pneg %p65
        %p283 = pneg %p62
        %p284 = pneg %p86
        %p285 = pneg %p83
        %p286 = pneg %p107
        %p287 = pneg %p104
        %p288 = pneg %p128
        %p289 = pneg %p125
        %p290 = pneg %p149
        %p291 = pneg %p146
        %p292 = pneg %p170
        %p293 = pneg %p167
        %p294 = pneg %p196
        %p295 = pneg %p193
        %s296 = smul.u32 32, %s23
        %p297 = scmp.lt.s32.totalorder %s296, 63
        %s298 = scalar_select %p297, %s296, 63
        %s299 = smul.addr %s298, 8
        %s300 = scalar_lea.vmem %s7, %s299
        %p301 = pneg %p222
        %p302 = pneg %p219
        %s303 = sand.u32 %s209, 1
        %s304 = scalar_lea.sflag [#allocation3], %s303
        %s305 = sand.u32 %s209, 1
        %s306 = smul.addr %s305, 2
        %s307 = scalar_lea.vmem [#allocation2], %s306
        %s308 = smul.u32 32, %s23
        %p309 = scmp.lt.s32.totalorder %s308, 63
        %s310 = scalar_select %p309, %s308, 63
        %s311 = smul.addr %s310, 8
        %s312 = scalar_lea.vmem %s0, %s311
        %s313 = smul.u32 32, %s23
        %s314 = smul.u32 32, %s23
        %p315 = scmp.lt.s32.totalorder %s314, 63
        %s316 = scalar_select %p315, %s314, 63
        %s317 = smul.addr %s316, 8
        %s318 = scalar_lea.vmem %s7, %s317
        %s319 = smul.u32 32, %s23
        %v320 = vld [vmem:[%s312] sm:$0xff]
        %v321 = vld [vmem:[%s312 + $0x8] sm:$0xff]
        %v322 = vld [vmem:[%s312 + $0x10] sm:$0xff]
        %v323 = vld [vmem:[%s312 + $0x18] sm:$0xff]
        %v324 = vld [vmem:[%s312 + $0x20] sm:$0xff]
        %v325 = vld [vmem:[%s312 + $0x28] sm:$0xff]
        %v326 = vld [vmem:[%s312 + $0x30] sm:$0xff]
        %v327 = vld [vmem:[%s312 + $0x38] sm:$0xff]
        %v328 = vld [vmem:[%s312 + $0x40] sm:$0xff]
        %v329 = vld [vmem:[%s312 + $0x48] sm:$0xff]
        %v330 = vld [vmem:[%s312 + $0x50] sm:$0xff]
        %v331 = vld [vmem:[%s312 + $0x58] sm:$0xff]
        %v332 = vld [vmem:[%s312 + $0x60] sm:$0xff]
        %v333 = vld [vmem:[%s312 + $0x68] sm:$0xff]
        %v334 = vld [vmem:[%s312 + $0x70] sm:$0xff]
        %v335 = vld [vmem:[%s312 + $0x78] sm:$0xff]
        %v336 = vld [vmem:[%s312 + $0x80] sm:$0xff]
        %v337 = vld [vmem:[%s312 + $0x88] sm:$0xff]
        %v338 = vld [vmem:[%s312 + $0x90] sm:$0xff]
        %v339 = vld [vmem:[%s312 + $0x98] sm:$0xff]
        %v340 = vld [vmem:[%s312 + $0xa0] sm:$0xff]
        %v341 = vld [vmem:[%s312 + $0xa8] sm:$0xff]
        %v342 = vld [vmem:[%s312 + $0xb0] sm:$0xff]
        %v343 = vld [vmem:[%s312 + $0xb8] sm:$0xff]
        %v344 = vld [vmem:[%s312 + $0xc0] sm:$0xff]
        %v345 = vld [vmem:[%s312 + $0xc8] sm:$0xff]
        %v346 = vld [vmem:[%s312 + $0xd0] sm:$0xff]
        %v347 = vld [vmem:[%s312 + $0xd8] sm:$0xff]
        %v348 = vld [vmem:[%s312 + $0xe0] sm:$0xff]
        %v349 = vld [vmem:[%s312 + $0xe8] sm:$0xff]
        %v350 = vld [vmem:[%s312 + $0xf0] sm:$0xff]
        %v351 = vld [vmem:[%s312 + $0xf8] sm:$0xff]
        %v352 = vpack.c.bf16 %v320, %v320
        %v353 = vpack.c.bf16 %v321, %v321
        %v354 = vpack.c.bf16 %v322, %v322
        %v355 = vpack.c.bf16 %v323, %v323
        %v356 = vpack.c.bf16 %v324, %v324
        %v357 = vpack.c.bf16 %v325, %v325
        %v358 = vpack.c.bf16 %v326, %v326
        %v359 = vpack.c.bf16 %v327, %v327
        %v360 = vpack.c.bf16 %v328, %v328
        %v361 = vpack.c.bf16 %v329, %v329
        %v362 = vpack.c.bf16 %v330, %v330
        %v363 = vpack.c.bf16 %v331, %v331
        %v364 = vpack.c.bf16 %v332, %v332
        %v365 = vpack.c.bf16 %v333, %v333
        %v366 = vpack.c.bf16 %v334, %v334
        %v367 = vpack.c.bf16 %v335, %v335
        %v368 = vpack.c.bf16 %v336, %v336
        %v369 = vpack.c.bf16 %v337, %v337
        %v370 = vpack.c.bf16 %v338, %v338
        %v371 = vpack.c.bf16 %v339, %v339
        %v372 = vpack.c.bf16 %v340, %v340
        %v373 = vpack.c.bf16 %v341, %v341
        %v374 = vpack.c.bf16 %v342, %v342
        %v375 = vpack.c.bf16 %v343, %v343
        %v376 = vpack.c.bf16 %v344, %v344
        %v377 = vpack.c.bf16 %v345, %v345
        %v378 = vpack.c.bf16 %v346, %v346
        %v379 = vpack.c.bf16 %v347, %v347
        %v380 = vpack.c.bf16 %v348, %v348
        %v381 = vpack.c.bf16 %v349, %v349
        %v382 = vpack.c.bf16 %v350, %v350
        %v383 = vpack.c.bf16 %v351, %v351
        %v384 = vunpack.c.l.bf16 %v352
        %v385 = vunpack.c.l.bf16 %v353
        %v386 = vunpack.c.l.bf16 %v354
        %v387 = vunpack.c.l.bf16 %v355
        %v388 = vunpack.c.l.bf16 %v356
        %v389 = vunpack.c.l.bf16 %v357
        %v390 = vunpack.c.l.bf16 %v358
        %v391 = vunpack.c.l.bf16 %v359
        %v392 = vunpack.c.l.bf16 %v360
        %v393 = vunpack.c.l.bf16 %v361
        %v394 = vunpack.c.l.bf16 %v362
        %v395 = vunpack.c.l.bf16 %v363
        %v396 = vunpack.c.l.bf16 %v364
        %v397 = vunpack.c.l.bf16 %v365
        %v398 = vunpack.c.l.bf16 %v366
        %v399 = vunpack.c.l.bf16 %v367
        %v400 = vunpack.c.l.bf16 %v368
        %v401 = vunpack.c.l.bf16 %v369
        %v402 = vunpack.c.l.bf16 %v370
        %v403 = vunpack.c.l.bf16 %v371
        %v404 = vunpack.c.l.bf16 %v372
        %v405 = vunpack.c.l.bf16 %v373
        %v406 = vunpack.c.l.bf16 %v374
        %v407 = vunpack.c.l.bf16 %v375
        %v408 = vunpack.c.l.bf16 %v376
        %v409 = vunpack.c.l.bf16 %v377
        %v410 = vunpack.c.l.bf16 %v378
        %v411 = vunpack.c.l.bf16 %v379
        %v412 = vunpack.c.l.bf16 %v380
        %v413 = vunpack.c.l.bf16 %v381
        %v414 = vunpack.c.l.bf16 %v382
        %v415 = vunpack.c.l.bf16 %v383
        %v416 = vld [vmem:[%s1] sm:$0x1]
        %418 = vset.pattern.permute.xlu0 0
        %419 = vperm.xlu0 %418, %v384
        %v420 = vpop.permute.xlu0 %419
        %423 = vset.pattern.permute.xlu0 0
        %424 = vperm.xlu0 %423, %v385
        %v425 = vpop.permute.xlu0 %424
        %428 = vset.pattern.permute.xlu0 0
        %429 = vperm.xlu0 %428, %v386
        %v430 = vpop.permute.xlu0 %429
        %433 = vset.pattern.permute.xlu0 0
        %434 = vperm.xlu0 %433, %v387
        %v435 = vpop.permute.xlu0 %434
        %438 = vset.pattern.permute.xlu0 0
        %439 = vperm.xlu0 %438, %v388
        %v440 = vpop.permute.xlu0 %439
        %443 = vset.pattern.permute.xlu0 0
        %444 = vperm.xlu0 %443, %v389
        %v445 = vpop.permute.xlu0 %444
        %448 = vset.pattern.permute.xlu0 0
        %449 = vperm.xlu0 %448, %v390
        %v450 = vpop.permute.xlu0 %449
        %453 = vset.pattern.permute.xlu0 0
        %454 = vperm.xlu0 %453, %v391
        %v455 = vpop.permute.xlu0 %454
        %458 = vset.pattern.permute.xlu0 0
        %459 = vperm.xlu0 %458, %v392
        %v460 = vpop.permute.xlu0 %459
        %463 = vset.pattern.permute.xlu0 0
        %464 = vperm.xlu0 %463, %v393
        %v465 = vpop.permute.xlu0 %464
        %468 = vset.pattern.permute.xlu0 0
        %469 = vperm.xlu0 %468, %v394
        %v470 = vpop.permute.xlu0 %469
        %473 = vset.pattern.permute.xlu0 0
        %474 = vperm.xlu0 %473, %v395
        %v475 = vpop.permute.xlu0 %474
        %478 = vset.pattern.permute.xlu0 0
        %479 = vperm.xlu0 %478, %v396
        %v480 = vpop.permute.xlu0 %479
        %483 = vset.pattern.permute.xlu0 0
        %484 = vperm.xlu0 %483, %v397
        %v485 = vpop.permute.xlu0 %484
        %488 = vset.pattern.permute.xlu0 0
        %489 = vperm.xlu0 %488, %v398
        %v490 = vpop.permute.xlu0 %489
        %493 = vset.pattern.permute.xlu0 0
        %494 = vperm.xlu0 %493, %v399
        %v495 = vpop.permute.xlu0 %494
        %498 = vset.pattern.permute.xlu0 0
        %499 = vperm.xlu0 %498, %v400
        %v500 = vpop.permute.xlu0 %499
        %503 = vset.pattern.permute.xlu0 0
        %504 = vperm.xlu0 %503, %v401
        %v505 = vpop.permute.xlu0 %504
        %508 = vset.pattern.permute.xlu0 0
        %509 = vperm.xlu0 %508, %v402
        %v510 = vpop.permute.xlu0 %509
        %513 = vset.pattern.permute.xlu0 0
        %514 = vperm.xlu0 %513, %v403
        %v515 = vpop.permute.xlu0 %514
        %518 = vset.pattern.permute.xlu0 0
        %519 = vperm.xlu0 %518, %v404
        %v520 = vpop.permute.xlu0 %519
        %523 = vset.pattern.permute.xlu0 0
        %524 = vperm.xlu0 %523, %v405
        %v525 = vpop.permute.xlu0 %524
        %528 = vset.pattern.permute.xlu0 0
        %529 = vperm.xlu0 %528, %v406
        %v530 = vpop.permute.xlu0 %529
        %533 = vset.pattern.permute.xlu0 0
        %534 = vperm.xlu0 %533, %v407
        %v535 = vpop.permute.xlu0 %534
        %538 = vset.pattern.permute.xlu0 0
        %539 = vperm.xlu0 %538, %v408
        %v540 = vpop.permute.xlu0 %539
        %543 = vset.pattern.permute.xlu0 0
        %544 = vperm.xlu0 %543, %v409
        %v545 = vpop.permute.xlu0 %544
        %548 = vset.pattern.permute.xlu0 0
        %549 = vperm.xlu0 %548, %v410
        %v550 = vpop.permute.xlu0 %549
        %553 = vset.pattern.permute.xlu0 0
        %554 = vperm.xlu0 %553, %v411
        %v555 = vpop.permute.xlu0 %554
        %558 = vset.pattern.permute.xlu0 0
        %559 = vperm.xlu0 %558, %v412
        %v560 = vpop.permute.xlu0 %559
        %563 = vset.pattern.permute.xlu0 0
        %564 = vperm.xlu0 %563, %v413
        %v565 = vpop.permute.xlu0 %564
        %568 = vset.pattern.permute.xlu0 0
        %569 = vperm.xlu0 %568, %v414
        %v570 = vpop.permute.xlu0 %569
        %573 = vset.pattern.permute.xlu0 0
        %574 = vperm.xlu0 %573, %v415
        %v575 = vpop.permute.xlu0 %574
        %v577 = vperm.slane %v416, 0
        %v578 = vmul.f32 %v420, %v577
        %v579 = vmul.f32 %v425, %v577
        %v580 = vmul.f32 %v430, %v577
        %v581 = vmul.f32 %v435, %v577
        %v582 = vmul.f32 %v440, %v577
        %v583 = vmul.f32 %v445, %v577
        %v584 = vmul.f32 %v450, %v577
        %v585 = vmul.f32 %v455, %v577
        %v586 = vmul.f32 %v460, %v577
        %v587 = vmul.f32 %v465, %v577
        %v588 = vmul.f32 %v470, %v577
        %v589 = vmul.f32 %v475, %v577
        %v590 = vmul.f32 %v480, %v577
        %v591 = vmul.f32 %v485, %v577
        %v592 = vmul.f32 %v490, %v577
        %v593 = vmul.f32 %v495, %v577
        %v594 = vmul.f32 %v500, %v577
        %v595 = vmul.f32 %v505, %v577
        %v596 = vmul.f32 %v510, %v577
        %v597 = vmul.f32 %v515, %v577
        %v598 = vmul.f32 %v520, %v577
        %v599 = vmul.f32 %v525, %v577
        %v600 = vmul.f32 %v530, %v577
        %v601 = vmul.f32 %v535, %v577
        %v602 = vmul.f32 %v540, %v577
        %v603 = vmul.f32 %v545, %v577
        %v604 = vmul.f32 %v550, %v577
        %v605 = vmul.f32 %v555, %v577
        %v606 = vmul.f32 %v560, %v577
        %v607 = vmul.f32 %v565, %v577
        %v608 = vmul.f32 %v570, %v577
        %v609 = vmul.f32 %v575, %v577
        %v610 = vld [vmem:[%s1 + $0x1] sm:$0x1]
        %611 = vset.pattern.permute.xlu0 1
        %612 = vperm.xlu0 %611, %v384
        %v613 = vpop.permute.xlu0 %612
        %615 = vset.pattern.permute.xlu0 1
        %616 = vperm.xlu0 %615, %v385
        %v617 = vpop.permute.xlu0 %616
        %619 = vset.pattern.permute.xlu0 1
        %620 = vperm.xlu0 %619, %v386
        %v621 = vpop.permute.xlu0 %620
        %623 = vset.pattern.permute.xlu0 1
        %624 = vperm.xlu0 %623, %v387
        %v625 = vpop.permute.xlu0 %624
        %627 = vset.pattern.permute.xlu0 1
        %628 = vperm.xlu0 %627, %v388
        %v629 = vpop.permute.xlu0 %628
        %631 = vset.pattern.permute.xlu0 1
        %632 = vperm.xlu0 %631, %v389
        %v633 = vpop.permute.xlu0 %632
        %635 = vset.pattern.permute.xlu0 1
        %636 = vperm.xlu0 %635, %v390
        %v637 = vpop.permute.xlu0 %636
        %639 = vset.pattern.permute.xlu0 1
        %640 = vperm.xlu0 %639, %v391
        %v641 = vpop.permute.xlu0 %640
        %643 = vset.pattern.permute.xlu0 1
        %644 = vperm.xlu0 %643, %v392
        %v645 = vpop.permute.xlu0 %644
        %647 = vset.pattern.permute.xlu0 1
        %648 = vperm.xlu0 %647, %v393
        %v649 = vpop.permute.xlu0 %648
        %651 = vset.pattern.permute.xlu0 1
        %652 = vperm.xlu0 %651, %v394
        %v653 = vpop.permute.xlu0 %652
        %655 = vset.pattern.permute.xlu0 1
        %656 = vperm.xlu0 %655, %v395
        %v657 = vpop.permute.xlu0 %656
        %659 = vset.pattern.permute.xlu0 1
        %660 = vperm.xlu0 %659, %v396
        %v661 = vpop.permute.xlu0 %660
        %663 = vset.pattern.permute.xlu0 1
        %664 = vperm.xlu0 %663, %v397
        %v665 = vpop.permute.xlu0 %664
        %667 = vset.pattern.permute.xlu0 1
        %668 = vperm.xlu0 %667, %v398
        %v669 = vpop.permute.xlu0 %668
        %671 = vset.pattern.permute.xlu0 1
        %672 = vperm.xlu0 %671, %v399
        %v673 = vpop.permute.xlu0 %672
        %675 = vset.pattern.permute.xlu0 1
        %676 = vperm.xlu0 %675, %v400
        %v677 = vpop.permute.xlu0 %676
        %679 = vset.pattern.permute.xlu0 1
        %680 = vperm.xlu0 %679, %v401
        %v681 = vpop.permute.xlu0 %680
        %683 = vset.pattern.permute.xlu0 1
        %684 = vperm.xlu0 %683, %v402
        %v685 = vpop.permute.xlu0 %684
        %687 = vset.pattern.permute.xlu0 1
        %688 = vperm.xlu0 %687, %v403
        %v689 = vpop.permute.xlu0 %688
        %691 = vset.pattern.permute.xlu0 1
        %692 = vperm.xlu0 %691, %v404
        %v693 = vpop.permute.xlu0 %692
        %695 = vset.pattern.permute.xlu0 1
        %696 = vperm.xlu0 %695, %v405
        %v697 = vpop.permute.xlu0 %696
        %699 = vset.pattern.permute.xlu0 1
        %700 = vperm.xlu0 %699, %v406
        %v701 = vpop.permute.xlu0 %700
        %703 = vset.pattern.permute.xlu0 1
        %704 = vperm.xlu0 %703, %v407
        %v705 = vpop.permute.xlu0 %704
        %707 = vset.pattern.permute.xlu0 1
        %708 = vperm.xlu0 %707, %v408
        %v709 = vpop.permute.xlu0 %708
        %711 = vset.pattern.permute.xlu0 1
        %712 = vperm.xlu0 %711, %v409
        %v713 = vpop.permute.xlu0 %712
        %715 = vset.pattern.permute.xlu0 1
        %716 = vperm.xlu0 %715, %v410
        %v717 = vpop.permute.xlu0 %716
        %719 = vset.pattern.permute.xlu0 1
        %720 = vperm.xlu0 %719, %v411
        %v721 = vpop.permute.xlu0 %720
        %723 = vset.pattern.permute.xlu0 1
        %724 = vperm.xlu0 %723, %v412
        %v725 = vpop.permute.xlu0 %724
        %727 = vset.pattern.permute.xlu0 1
        %728 = vperm.xlu0 %727, %v413
        %v729 = vpop.permute.xlu0 %728
        %731 = vset.pattern.permute.xlu0 1
        %732 = vperm.xlu0 %731, %v414
        %v733 = vpop.permute.xlu0 %732
        %735 = vset.pattern.permute.xlu0 1
        %736 = vperm.xlu0 %735, %v415
        %v737 = vpop.permute.xlu0 %736
        %v739 = vperm.slane %v610, 0
        %v740 = vmul.f32 %v613, %v739
        %v741 = vmul.f32 %v617, %v739
        %v742 = vmul.f32 %v621, %v739
        %v743 = vmul.f32 %v625, %v739
        %v744 = vmul.f32 %v629, %v739
        %v745 = vmul.f32 %v633, %v739
        %v746 = vmul.f32 %v637, %v739
        %v747 = vmul.f32 %v641, %v739
        %v748 = vmul.f32 %v645, %v739
        %v749 = vmul.f32 %v649, %v739
        %v750 = vmul.f32 %v653, %v739
        %v751 = vmul.f32 %v657, %v739
        %v752 = vmul.f32 %v661, %v739
        %v753 = vmul.f32 %v665, %v739
        %v754 = vmul.f32 %v669, %v739
        %v755 = vmul.f32 %v673, %v739
        %v756 = vmul.f32 %v677, %v739
        %v757 = vmul.f32 %v681, %v739
        %v758 = vmul.f32 %v685, %v739
        %v759 = vmul.f32 %v689, %v739
        %v760 = vmul.f32 %v693, %v739
        %v761 = vmul.f32 %v697, %v739
        %v762 = vmul.f32 %v701, %v739
        %v763 = vmul.f32 %v705, %v739
        %v764 = vmul.f32 %v709, %v739
        %v765 = vmul.f32 %v713, %v739
        %v766 = vmul.f32 %v717, %v739
        %v767 = vmul.f32 %v721, %v739
        %v768 = vmul.f32 %v725, %v739
        %v769 = vmul.f32 %v729, %v739
        %v770 = vmul.f32 %v733, %v739
        %v771 = vmul.f32 %v737, %v739
        %v772 = vadd.f32 %v578, %v740
        %v773 = vadd.f32 %v579, %v741
        %v774 = vadd.f32 %v580, %v742
        %v775 = vadd.f32 %v581, %v743
        %v776 = vadd.f32 %v582, %v744
        %v777 = vadd.f32 %v583, %v745
        %v778 = vadd.f32 %v584, %v746
        %v779 = vadd.f32 %v585, %v747
        %v780 = vadd.f32 %v586, %v748
        %v781 = vadd.f32 %v587, %v749
        %v782 = vadd.f32 %v588, %v750
        %v783 = vadd.f32 %v589, %v751
        %v784 = vadd.f32 %v590, %v752
        %v785 = vadd.f32 %v591, %v753
        %v786 = vadd.f32 %v592, %v754
        %v787 = vadd.f32 %v593, %v755
        %v788 = vadd.f32 %v594, %v756
        %v789 = vadd.f32 %v595, %v757
        %v790 = vadd.f32 %v596, %v758
        %v791 = vadd.f32 %v597, %v759
        %v792 = vadd.f32 %v598, %v760
        %v793 = vadd.f32 %v599, %v761
        %v794 = vadd.f32 %v600, %v762
        %v795 = vadd.f32 %v601, %v763
        %v796 = vadd.f32 %v602, %v764
        %v797 = vadd.f32 %v603, %v765
        %v798 = vadd.f32 %v604, %v766
        %v799 = vadd.f32 %v605, %v767
        %v800 = vadd.f32 %v606, %v768
        %v801 = vadd.f32 %v607, %v769
        %v802 = vadd.f32 %v608, %v770
        %v803 = vadd.f32 %v609, %v771
        %v804 = vld [vmem:[%s1 + $0x2] sm:$0x1]
        %805 = vset.pattern.permute.xlu0 2
        %806 = vperm.xlu0 %805, %v384
        %v807 = vpop.permute.xlu0 %806
        %809 = vset.pattern.permute.xlu0 2
        %810 = vperm.xlu0 %809, %v385
        %v811 = vpop.permute.xlu0 %810
        %813 = vset.pattern.permute.xlu0 2
        %814 = vperm.xlu0 %813, %v386
        %v815 = vpop.permute.xlu0 %814
        %817 = vset.pattern.permute.xlu0 2
        %818 = vperm.xlu0 %817, %v387
        %v819 = vpop.permute.xlu0 %818
        %821 = vset.pattern.permute.xlu0 2
        %822 = vperm.xlu0 %821, %v388
        %v823 = vpop.permute.xlu0 %822
        %825 = vset.pattern.permute.xlu0 2
        %826 = vperm.xlu0 %825, %v389
        %v827 = vpop.permute.xlu0 %826
        %829 = vset.pattern.permute.xlu0 2
        %830 = vperm.xlu0 %829, %v390
        %v831 = vpop.permute.xlu0 %830
        %833 = vset.pattern.permute.xlu0 2
        %834 = vperm.xlu0 %833, %v391
        %v835 = vpop.permute.xlu0 %834
        %837 = vset.pattern.permute.xlu0 2
        %838 = vperm.xlu0 %837, %v392
        %v839 = vpop.permute.xlu0 %838
        %841 = vset.pattern.permute.xlu0 2
        %842 = vperm.xlu0 %841, %v393
        %v843 = vpop.permute.xlu0 %842
        %845 = vset.pattern.permute.xlu0 2
        %846 = vperm.xlu0 %845, %v394
        %v847 = vpop.permute.xlu0 %846
        %849 = vset.pattern.permute.xlu0 2
        %850 = vperm.xlu0 %849, %v395
        %v851 = vpop.permute.xlu0 %850
        %853 = vset.pattern.permute.xlu0 2
        %854 = vperm.xlu0 %853, %v396
        %v855 = vpop.permute.xlu0 %854
        %857 = vset.pattern.permute.xlu0 2
        %858 = vperm.xlu0 %857, %v397
        %v859 = vpop.permute.xlu0 %858
        %861 = vset.pattern.permute.xlu0 2
        %862 = vperm.xlu0 %861, %v398
        %v863 = vpop.permute.xlu0 %862
        %865 = vset.pattern.permute.xlu0 2
        %866 = vperm.xlu0 %865, %v399
        %v867 = vpop.permute.xlu0 %866
        %869 = vset.pattern.permute.xlu0 2
        %870 = vperm.xlu0 %869, %v400
        %v871 = vpop.permute.xlu0 %870
        %873 = vset.pattern.permute.xlu0 2
        %874 = vperm.xlu0 %873, %v401
        %v875 = vpop.permute.xlu0 %874
        %877 = vset.pattern.permute.xlu0 2
        %878 = vperm.xlu0 %877, %v402
        %v879 = vpop.permute.xlu0 %878
        %881 = vset.pattern.permute.xlu0 2
        %882 = vperm.xlu0 %881, %v403
        %v883 = vpop.permute.xlu0 %882
        %885 = vset.pattern.permute.xlu0 2
        %886 = vperm.xlu0 %885, %v404
        %v887 = vpop.permute.xlu0 %886
        %889 = vset.pattern.permute.xlu0 2
        %890 = vperm.xlu0 %889, %v405
        %v891 = vpop.permute.xlu0 %890
        %893 = vset.pattern.permute.xlu0 2
        %894 = vperm.xlu0 %893, %v406
        %v895 = vpop.permute.xlu0 %894
        %897 = vset.pattern.permute.xlu0 2
        %898 = vperm.xlu0 %897, %v407
        %v899 = vpop.permute.xlu0 %898
        %901 = vset.pattern.permute.xlu0 2
        %902 = vperm.xlu0 %901, %v408
        %v903 = vpop.permute.xlu0 %902
        %905 = vset.pattern.permute.xlu0 2
        %906 = vperm.xlu0 %905, %v409
        %v907 = vpop.permute.xlu0 %906
        %909 = vset.pattern.permute.xlu0 2
        %910 = vperm.xlu0 %909, %v410
        %v911 = vpop.permute.xlu0 %910
        %913 = vset.pattern.permute.xlu0 2
        %914 = vperm.xlu0 %913, %v411
        %v915 = vpop.permute.xlu0 %914
        %917 = vset.pattern.permute.xlu0 2
        %918 = vperm.xlu0 %917, %v412
        %v919 = vpop.permute.xlu0 %918
        %921 = vset.pattern.permute.xlu0 2
        %922 = vperm.xlu0 %921, %v413
        %v923 = vpop.permute.xlu0 %922
        %925 = vset.pattern.permute.xlu0 2
        %926 = vperm.xlu0 %925, %v414
        %v927 = vpop.permute.xlu0 %926
        %929 = vset.pattern.permute.xlu0 2
        %930 = vperm.xlu0 %929, %v415
        %v931 = vpop.permute.xlu0 %930
        %v933 = vperm.slane %v804, 0
        %v934 = vmul.f32 %v807, %v933
        %v935 = vmul.f32 %v811, %v933
        %v936 = vmul.f32 %v815, %v933
        %v937 = vmul.f32 %v819, %v933
        %v938 = vmul.f32 %v823, %v933
        %v939 = vmul.f32 %v827, %v933
        %v940 = vmul.f32 %v831, %v933
        %v941 = vmul.f32 %v835, %v933
        %v942 = vmul.f32 %v839, %v933
        %v943 = vmul.f32 %v843, %v933
        %v944 = vmul.f32 %v847, %v933
        %v945 = vmul.f32 %v851, %v933
        %v946 = vmul.f32 %v855, %v933
        %v947 = vmul.f32 %v859, %v933
        %v948 = vmul.f32 %v863, %v933
        %v949 = vmul.f32 %v867, %v933
        %v950 = vmul.f32 %v871, %v933
        %v951 = vmul.f32 %v875, %v933
        %v952 = vmul.f32 %v879, %v933
        %v953 = vmul.f32 %v883, %v933
        %v954 = vmul.f32 %v887, %v933
        %v955 = vmul.f32 %v891, %v933
        %v956 = vmul.f32 %v895, %v933
        %v957 = vmul.f32 %v899, %v933
        %v958 = vmul.f32 %v903, %v933
        %v959 = vmul.f32 %v907, %v933
        %v960 = vmul.f32 %v911, %v933
        %v961 = vmul.f32 %v915, %v933
        %v962 = vmul.f32 %v919, %v933
        %v963 = vmul.f32 %v923, %v933
        %v964 = vmul.f32 %v927, %v933
        %v965 = vmul.f32 %v931, %v933
        %v966 = vadd.f32 %v772, %v934
        %v967 = vadd.f32 %v773, %v935
        %v968 = vadd.f32 %v774, %v936
        %v969 = vadd.f32 %v775, %v937
        %v970 = vadd.f32 %v776, %v938
        %v971 = vadd.f32 %v777, %v939
        %v972 = vadd.f32 %v778, %v940
        %v973 = vadd.f32 %v779, %v941
        %v974 = vadd.f32 %v780, %v942
        %v975 = vadd.f32 %v781, %v943
        %v976 = vadd.f32 %v782, %v944
        %v977 = vadd.f32 %v783, %v945
        %v978 = vadd.f32 %v784, %v946
        %v979 = vadd.f32 %v785, %v947
        %v980 = vadd.f32 %v786, %v948
        %v981 = vadd.f32 %v787, %v949
        %v982 = vadd.f32 %v788, %v950
        %v983 = vadd.f32 %v789, %v951
        %v984 = vadd.f32 %v790, %v952
        %v985 = vadd.f32 %v791, %v953
        %v986 = vadd.f32 %v792, %v954
        %v987 = vadd.f32 %v793, %v955
        %v988 = vadd.f32 %v794, %v956
        %v989 = vadd.f32 %v795, %v957
        %v990 = vadd.f32 %v796, %v958
        %v991 = vadd.f32 %v797, %v959
        %v992 = vadd.f32 %v798, %v960
        %v993 = vadd.f32 %v799, %v961
        %v994 = vadd.f32 %v800, %v962
        %v995 = vadd.f32 %v801, %v963
        %v996 = vadd.f32 %v802, %v964
        %v997 = vadd.f32 %v803, %v965
        %v998 = vld [vmem:[%s1 + $0x3] sm:$0x1]
        %999 = vset.pattern.permute.xlu0 3
        %1000 = vperm.xlu0 %999, %v384
        %v1001 = vpop.permute.xlu0 %1000
        %1003 = vset.pattern.permute.xlu0 3
        %1004 = vperm.xlu0 %1003, %v385
        %v1005 = vpop.permute.xlu0 %1004
        %1007 = vset.pattern.permute.xlu0 3
        %1008 = vperm.xlu0 %1007, %v386
        %v1009 = vpop.permute.xlu0 %1008
        %1011 = vset.pattern.permute.xlu0 3
        %1012 = vperm.xlu0 %1011, %v387
        %v1013 = vpop.permute.xlu0 %1012
        %1015 = vset.pattern.permute.xlu0 3
        %1016 = vperm.xlu0 %1015, %v388
        %v1017 = vpop.permute.xlu0 %1016
        %1019 = vset.pattern.permute.xlu0 3
        %1020 = vperm.xlu0 %1019, %v389
        %v1021 = vpop.permute.xlu0 %1020
        %1023 = vset.pattern.permute.xlu0 3
        %1024 = vperm.xlu0 %1023, %v390
        %v1025 = vpop.permute.xlu0 %1024
        %1027 = vset.pattern.permute.xlu0 3
        %1028 = vperm.xlu0 %1027, %v391
        %v1029 = vpop.permute.xlu0 %1028
        %1031 = vset.pattern.permute.xlu0 3
        %1032 = vperm.xlu0 %1031, %v392
        %v1033 = vpop.permute.xlu0 %1032
        %1035 = vset.pattern.permute.xlu0 3
        %1036 = vperm.xlu0 %1035, %v393
        %v1037 = vpop.permute.xlu0 %1036
        %1039 = vset.pattern.permute.xlu0 3
        %1040 = vperm.xlu0 %1039, %v394
        %v1041 = vpop.permute.xlu0 %1040
        %1043 = vset.pattern.permute.xlu0 3
        %1044 = vperm.xlu0 %1043, %v395
        %v1045 = vpop.permute.xlu0 %1044
        %1047 = vset.pattern.permute.xlu0 3
        %1048 = vperm.xlu0 %1047, %v396
        %v1049 = vpop.permute.xlu0 %1048
        %1051 = vset.pattern.permute.xlu0 3
        %1052 = vperm.xlu0 %1051, %v397
        %v1053 = vpop.permute.xlu0 %1052
        %1055 = vset.pattern.permute.xlu0 3
        %1056 = vperm.xlu0 %1055, %v398
        %v1057 = vpop.permute.xlu0 %1056
        %1059 = vset.pattern.permute.xlu0 3
        %1060 = vperm.xlu0 %1059, %v399
        %v1061 = vpop.permute.xlu0 %1060
        %1063 = vset.pattern.permute.xlu0 3
        %1064 = vperm.xlu0 %1063, %v400
        %v1065 = vpop.permute.xlu0 %1064
        %1067 = vset.pattern.permute.xlu0 3
        %1068 = vperm.xlu0 %1067, %v401
        %v1069 = vpop.permute.xlu0 %1068
        %1071 = vset.pattern.permute.xlu0 3
        %1072 = vperm.xlu0 %1071, %v402
        %v1073 = vpop.permute.xlu0 %1072
        %1075 = vset.pattern.permute.xlu0 3
        %1076 = vperm.xlu0 %1075, %v403
        %v1077 = vpop.permute.xlu0 %1076
        %1079 = vset.pattern.permute.xlu0 3
        %1080 = vperm.xlu0 %1079, %v404
        %v1081 = vpop.permute.xlu0 %1080
        %1083 = vset.pattern.permute.xlu0 3
        %1084 = vperm.xlu0 %1083, %v405
        %v1085 = vpop.permute.xlu0 %1084
        %1087 = vset.pattern.permute.xlu0 3
        %1088 = vperm.xlu0 %1087, %v406
        %v1089 = vpop.permute.xlu0 %1088
        %1091 = vset.pattern.permute.xlu0 3
        %1092 = vperm.xlu0 %1091, %v407
        %v1093 = vpop.permute.xlu0 %1092
        %1095 = vset.pattern.permute.xlu0 3
        %1096 = vperm.xlu0 %1095, %v408
        %v1097 = vpop.permute.xlu0 %1096
        %1099 = vset.pattern.permute.xlu0 3
        %1100 = vperm.xlu0 %1099, %v409
        %v1101 = vpop.permute.xlu0 %1100
        %1103 = vset.pattern.permute.xlu0 3
        %1104 = vperm.xlu0 %1103, %v410
        %v1105 = vpop.permute.xlu0 %1104
        %1107 = vset.pattern.permute.xlu0 3
        %1108 = vperm.xlu0 %1107, %v411
        %v1109 = vpop.permute.xlu0 %1108
        %1111 = vset.pattern.permute.xlu0 3
        %1112 = vperm.xlu0 %1111, %v412
        %v1113 = vpop.permute.xlu0 %1112
        %1115 = vset.pattern.permute.xlu0 3
        %1116 = vperm.xlu0 %1115, %v413
        %v1117 = vpop.permute.xlu0 %1116
        %1119 = vset.pattern.permute.xlu0 3
        %1120 = vperm.xlu0 %1119, %v414
        %v1121 = vpop.permute.xlu0 %1120
        %1123 = vset.pattern.permute.xlu0 3
        %1124 = vperm.xlu0 %1123, %v415
        %v1125 = vpop.permute.xlu0 %1124
        %v1127 = vperm.slane %v998, 0
        %v1128 = vmul.f32 %v1001, %v1127
        %v1129 = vmul.f32 %v1005, %v1127
        %v1130 = vmul.f32 %v1009, %v1127
        %v1131 = vmul.f32 %v1013, %v1127
        %v1132 = vmul.f32 %v1017, %v1127
        %v1133 = vmul.f32 %v1021, %v1127
        %v1134 = vmul.f32 %v1025, %v1127
        %v1135 = vmul.f32 %v1029, %v1127
        %v1136 = vmul.f32 %v1033, %v1127
        %v1137 = vmul.f32 %v1037, %v1127
        %v1138 = vmul.f32 %v1041, %v1127
        %v1139 = vmul.f32 %v1045, %v1127
        %v1140 = vmul.f32 %v1049, %v1127
        %v1141 = vmul.f32 %v1053, %v1127
        %v1142 = vmul.f32 %v1057, %v1127
        %v1143 = vmul.f32 %v1061, %v1127
        %v1144 = vmul.f32 %v1065, %v1127
        %v1145 = vmul.f32 %v1069, %v1127
        %v1146 = vmul.f32 %v1073, %v1127
        %v1147 = vmul.f32 %v1077, %v1127
        %v1148 = vmul.f32 %v1081, %v1127
        %v1149 = vmul.f32 %v1085, %v1127
        %v1150 = vmul.f32 %v1089, %v1127
        %v1151 = vmul.f32 %v1093, %v1127
        %v1152 = vmul.f32 %v1097, %v1127
        %v1153 = vmul.f32 %v1101, %v1127
        %v1154 = vmul.f32 %v1105, %v1127
        %v1155 = vmul.f32 %v1109, %v1127
        %v1156 = vmul.f32 %v1113, %v1127
        %v1157 = vmul.f32 %v1117, %v1127
        %v1158 = vmul.f32 %v1121, %v1127
        %v1159 = vmul.f32 %v1125, %v1127
        %v1160 = vadd.f32 %v966, %v1128
        %v1161 = vadd.f32 %v967, %v1129
        %v1162 = vadd.f32 %v968, %v1130
        %v1163 = vadd.f32 %v969, %v1131
        %v1164 = vadd.f32 %v970, %v1132
        %v1165 = vadd.f32 %v971, %v1133
        %v1166 = vadd.f32 %v972, %v1134
        %v1167 = vadd.f32 %v973, %v1135
        %v1168 = vadd.f32 %v974, %v1136
        %v1169 = vadd.f32 %v975, %v1137
        %v1170 = vadd.f32 %v976, %v1138
        %v1171 = vadd.f32 %v977, %v1139
        %v1172 = vadd.f32 %v978, %v1140
        %v1173 = vadd.f32 %v979, %v1141
        %v1174 = vadd.f32 %v980, %v1142
        %v1175 = vadd.f32 %v981, %v1143
        %v1176 = vadd.f32 %v982, %v1144
        %v1177 = vadd.f32 %v983, %v1145
        %v1178 = vadd.f32 %v984, %v1146
        %v1179 = vadd.f32 %v985, %v1147
        %v1180 = vadd.f32 %v986, %v1148
        %v1181 = vadd.f32 %v987, %v1149
        %v1182 = vadd.f32 %v988, %v1150
        %v1183 = vadd.f32 %v989, %v1151
        %v1184 = vadd.f32 %v990, %v1152
        %v1185 = vadd.f32 %v991, %v1153
        %v1186 = vadd.f32 %v992, %v1154
        %v1187 = vadd.f32 %v993, %v1155
        %v1188 = vadd.f32 %v994, %v1156
        %v1189 = vadd.f32 %v995, %v1157
        %v1190 = vadd.f32 %v996, %v1158
        %v1191 = vadd.f32 %v997, %v1159
        %v1192 = vld [vmem:[%s2] sm:$0x1]
        %v1194 = vperm.slane %v1192, 0
        %v1196 = vadd.f32 %v1160, %v1194
        %v1197 = vadd.f32 %v1161, %v1194
        %v1198 = vadd.f32 %v1162, %v1194
        %v1199 = vadd.f32 %v1163, %v1194
        %v1200 = vadd.f32 %v1164, %v1194
        %v1201 = vadd.f32 %v1165, %v1194
        %v1202 = vadd.f32 %v1166, %v1194
        %v1203 = vadd.f32 %v1167, %v1194
        %v1204 = vadd.f32 %v1168, %v1194
        %v1205 = vadd.f32 %v1169, %v1194
        %v1206 = vadd.f32 %v1170, %v1194
        %v1207 = vadd.f32 %v1171, %v1194
        %v1208 = vadd.f32 %v1172, %v1194
        %v1209 = vadd.f32 %v1173, %v1194
        %v1210 = vadd.f32 %v1174, %v1194
        %v1211 = vadd.f32 %v1175, %v1194
        %v1212 = vadd.f32 %v1176, %v1194
        %v1213 = vadd.f32 %v1177, %v1194
        %v1214 = vadd.f32 %v1178, %v1194
        %v1215 = vadd.f32 %v1179, %v1194
        %v1216 = vadd.f32 %v1180, %v1194
        %v1217 = vadd.f32 %v1181, %v1194
        %v1218 = vadd.f32 %v1182, %v1194
        %v1219 = vadd.f32 %v1183, %v1194
        %v1220 = vadd.f32 %v1184, %v1194
        %v1221 = vadd.f32 %v1185, %v1194
        %v1222 = vadd.f32 %v1186, %v1194
        %v1223 = vadd.f32 %v1187, %v1194
        %v1224 = vadd.f32 %v1188, %v1194
        %v1225 = vadd.f32 %v1189, %v1194
        %v1226 = vadd.f32 %v1190, %v1194
        %v1227 = vadd.f32 %v1191, %v1194
        %v1228 = vmax.f32 %v1196, 0.0
        %v1229 = vmax.f32 %v1197, 0.0
        %v1230 = vmax.f32 %v1198, 0.0
        %v1231 = vmax.f32 %v1199, 0.0
        %v1232 = vmax.f32 %v1200, 0.0
        %v1233 = vmax.f32 %v1201, 0.0
        %v1234 = vmax.f32 %v1202, 0.0
        %v1235 = vmax.f32 %v1203, 0.0
        %v1236 = vmax.f32 %v1204, 0.0
        %v1237 = vmax.f32 %v1205, 0.0
        %v1238 = vmax.f32 %v1206, 0.0
        %v1239 = vmax.f32 %v1207, 0.0
        %v1240 = vmax.f32 %v1208, 0.0
        %v1241 = vmax.f32 %v1209, 0.0
        %v1242 = vmax.f32 %v1210, 0.0
        %v1243 = vmax.f32 %v1211, 0.0
        %v1244 = vmax.f32 %v1212, 0.0
        %v1245 = vmax.f32 %v1213, 0.0
        %v1246 = vmax.f32 %v1214, 0.0
        %v1247 = vmax.f32 %v1215, 0.0
        %v1248 = vmax.f32 %v1216, 0.0
        %v1249 = vmax.f32 %v1217, 0.0
        %v1250 = vmax.f32 %v1218, 0.0
        %v1251 = vmax.f32 %v1219, 0.0
        %v1252 = vmax.f32 %v1220, 0.0
        %v1253 = vmax.f32 %v1221, 0.0
        %v1254 = vmax.f32 %v1222, 0.0
        %v1255 = vmax.f32 %v1223, 0.0
        %v1256 = vmax.f32 %v1224, 0.0
        %v1257 = vmax.f32 %v1225, 0.0
        %v1258 = vmax.f32 %v1226, 0.0
        %v1259 = vmax.f32 %v1227, 0.0
        %v1260 = vpack.c.bf16 %v1229, %v1228
        %v1261 = vpack.c.bf16 %v1231, %v1230
        %v1262 = vpack.c.bf16 %v1233, %v1232
        %v1263 = vpack.c.bf16 %v1235, %v1234
        %v1264 = vpack.c.bf16 %v1237, %v1236
        %v1265 = vpack.c.bf16 %v1239, %v1238
        %v1266 = vpack.c.bf16 %v1241, %v1240
        %v1267 = vpack.c.bf16 %v1243, %v1242
        %v1268 = vpack.c.bf16 %v1245, %v1244
        %v1269 = vpack.c.bf16 %v1247, %v1246
        %v1270 = vpack.c.bf16 %v1249, %v1248
        %v1271 = vpack.c.bf16 %v1251, %v1250
        %v1272 = vpack.c.bf16 %v1253, %v1252
        %v1273 = vpack.c.bf16 %v1255, %v1254
        %v1274 = vpack.c.bf16 %v1257, %v1256
        %v1275 = vpack.c.bf16 %v1259, %v1258
        %v1276 = vld [vmem:[%s3] sm:$0xf]
        %v1277 = vld [vmem:[%s3 + $0x4] sm:$0xf]
        %v1278 = vld [vmem:[%s3 + $0x8] sm:$0xf]
        %v1279 = vld [vmem:[%s3 + $0xc] sm:$0xf]
        %v1280 = vld [vmem:[%s3 + $0x10] sm:$0xf]
        %v1281 = vld [vmem:[%s3 + $0x14] sm:$0xf]
        %v1282 = vld [vmem:[%s3 + $0x18] sm:$0xf]
        %v1283 = vld [vmem:[%s3 + $0x1c] sm:$0xf]
        %v1284 = vld [vmem:[%s3 + $0x20] sm:$0xf]
        %v1285 = vld [vmem:[%s3 + $0x24] sm:$0xf]
        %v1286 = vld [vmem:[%s3 + $0x28] sm:$0xf]
        %v1287 = vld [vmem:[%s3 + $0x2c] sm:$0xf]
        %v1288 = vld [vmem:[%s3 + $0x30] sm:$0xf]
        %v1289 = vld [vmem:[%s3 + $0x34] sm:$0xf]
        %v1290 = vld [vmem:[%s3 + $0x38] sm:$0xf]
        %v1291 = vld [vmem:[%s3 + $0x3c] sm:$0xf]
        %v1292 = vld [vmem:[%s4] sm:$0x1]
        %v1294 = vperm.slane %v1292, 0
        %v1312 = vunpack.c.l.b16 %v1276
        %v1313 = vunpack.c.l.b16 %v1277
        %v1314 = vunpack.c.l.b16 %v1278
        %v1315 = vunpack.c.l.b16 %v1279
        %v1316 = vunpack.c.l.b16 %v1280
        %v1317 = vunpack.c.l.b16 %v1281
        %v1318 = vunpack.c.l.b16 %v1282
        %v1319 = vunpack.c.l.b16 %v1283
        %v1320 = vunpack.c.l.b16 %v1284
        %v1321 = vunpack.c.l.b16 %v1285
        %v1322 = vunpack.c.l.b16 %v1286
        %v1323 = vunpack.c.l.b16 %v1287
        %v1324 = vunpack.c.l.b16 %v1288
        %v1325 = vunpack.c.l.b16 %v1289
        %v1326 = vunpack.c.l.b16 %v1290
        %v1327 = vunpack.c.l.b16 %v1291
        %v1328 = vpack.c.b16 %v1313, %v1312
        %v1329 = vpack.c.b16 %v1315, %v1314
        %v1330 = vpack.c.b16 %v1317, %v1316
        %v1331 = vpack.c.b16 %v1319, %v1318
        %v1332 = vpack.c.b16 %v1321, %v1320
        %v1333 = vpack.c.b16 %v1323, %v1322
        %v1334 = vpack.c.b16 %v1325, %v1324
        %v1335 = vpack.c.b16 %v1327, %v1326
        %1344 = vmatpush.bf16.msra.mxu0 %v1335
        %1345 = vmatpush.bf16.msra.mxu0 %v1334
        %1346 = vmatpush.bf16.msra.mxu0 %v1333
        %1347 = vmatpush.bf16.msra.mxu0 %v1332
        %1348 = vmatpush.bf16.msra.mxu0 %v1331
        %1349 = vmatpush.bf16.msra.mxu0 %v1330
        %1350 = vmatpush.bf16.msra.mxu0 %v1329
        %1351 = vmatpush.bf16.msra.mxu0 %v1328
        %1352 = vmatmul.bf16.gmra.mxu0 %v1260
        %v1353 = vpop.f32.mrf.mxu0
        %v1354 = vadd.f32 %v1294, %v1353
        %v1355 = vpop.f32.mrf.mxu0
        %v1356 = vadd.f32 %v1294, %v1355
        %1357 = vmatmul.bf16.gmra.mxu0 %v1261
        %v1358 = vpop.f32.mrf.mxu0
        %v1359 = vadd.f32 %v1294, %v1358
        %v1360 = vpop.f32.mrf.mxu0
        %v1361 = vadd.f32 %v1294, %v1360
        %1362 = vmatmul.bf16.gmra.mxu0 %v1262
        %v1363 = vpop.f32.mrf.mxu0
        %v1364 = vadd.f32 %v1294, %v1363
        %v1365 = vpop.f32.mrf.mxu0
        %v1366 = vadd.f32 %v1294, %v1365
        %1367 = vmatmul.bf16.gmra.mxu0 %v1263
        %v1368 = vpop.f32.mrf.mxu0
        %v1369 = vadd.f32 %v1294, %v1368
        %v1370 = vpop.f32.mrf.mxu0
        %v1371 = vadd.f32 %v1294, %v1370
        %1372 = vmatmul.bf16.gmra.mxu0 %v1264
        %v1373 = vpop.f32.mrf.mxu0
        %v1374 = vadd.f32 %v1294, %v1373
        %v1375 = vpop.f32.mrf.mxu0
        %v1376 = vadd.f32 %v1294, %v1375
        %1377 = vmatmul.bf16.gmra.mxu0 %v1265
        %v1378 = vpop.f32.mrf.mxu0
        %v1379 = vadd.f32 %v1294, %v1378
        %v1380 = vpop.f32.mrf.mxu0
        %v1381 = vadd.f32 %v1294, %v1380
        %1382 = vmatmul.bf16.gmra.mxu0 %v1266
        %v1383 = vpop.f32.mrf.mxu0
        %v1384 = vadd.f32 %v1294, %v1383
        %v1385 = vpop.f32.mrf.mxu0
        %v1386 = vadd.f32 %v1294, %v1385
        %1387 = vmatmul.bf16.gmra.mxu0 %v1267
        %v1388 = vpop.f32.mrf.mxu0
        %v1389 = vadd.f32 %v1294, %v1388
        %v1390 = vpop.f32.mrf.mxu0
        %v1391 = vadd.f32 %v1294, %v1390
        %1392 = vmatmul.bf16.gmra.mxu0 %v1268
        %v1393 = vpop.f32.mrf.mxu0
        %v1394 = vadd.f32 %v1294, %v1393
        %v1395 = vpop.f32.mrf.mxu0
        %v1396 = vadd.f32 %v1294, %v1395
        %1397 = vmatmul.bf16.gmra.mxu0 %v1269
        %v1398 = vpop.f32.mrf.mxu0
        %v1399 = vadd.f32 %v1294, %v1398
        %v1400 = vpop.f32.mrf.mxu0
        %v1401 = vadd.f32 %v1294, %v1400
        %1402 = vmatmul.bf16.gmra.mxu0 %v1270
        %v1403 = vpop.f32.mrf.mxu0
        %v1404 = vadd.f32 %v1294, %v1403
        %v1405 = vpop.f32.mrf.mxu0
        %v1406 = vadd.f32 %v1294, %v1405
        %1407 = vmatmul.bf16.gmra.mxu0 %v1271
        %v1408 = vpop.f32.mrf.mxu0
        %v1409 = vadd.f32 %v1294, %v1408
        %v1410 = vpop.f32.mrf.mxu0
        %v1411 = vadd.f32 %v1294, %v1410
        %1412 = vmatmul.bf16.gmra.mxu0 %v1272
        %v1413 = vpop.f32.mrf.mxu0
        %v1414 = vadd.f32 %v1294, %v1413
        %v1415 = vpop.f32.mrf.mxu0
        %v1416 = vadd.f32 %v1294, %v1415
        %1417 = vmatmul.bf16.gmra.mxu0 %v1273
        %v1418 = vpop.f32.mrf.mxu0
        %v1419 = vadd.f32 %v1294, %v1418
        %v1420 = vpop.f32.mrf.mxu0
        %v1421 = vadd.f32 %v1294, %v1420
        %1422 = vmatmul.bf16.gmra.mxu0 %v1274
        %v1423 = vpop.f32.mrf.mxu0
        %v1424 = vadd.f32 %v1294, %v1423
        %v1425 = vpop.f32.mrf.mxu0
        %v1426 = vadd.f32 %v1294, %v1425
        %1427 = vmatmul.bf16.gmra.mxu0 %v1275
        %v1428 = vpop.f32.mrf.mxu0
        %v1429 = vadd.f32 %v1294, %v1428
        %v1430 = vpop.f32.mrf.mxu0
        %v1431 = vadd.f32 %v1294, %v1430
        %1432 = vdwg.mxu0
        %v1433 = vmax.f32 %v1354, 0.0
        %v1434 = vmax.f32 %v1356, 0.0
        %v1435 = vmax.f32 %v1359, 0.0
        %v1436 = vmax.f32 %v1361, 0.0
        %v1437 = vmax.f32 %v1364, 0.0
        %v1438 = vmax.f32 %v1366, 0.0
        %v1439 = vmax.f32 %v1369, 0.0
        %v1440 = vmax.f32 %v1371, 0.0
        %v1441 = vmax.f32 %v1374, 0.0
        %v1442 = vmax.f32 %v1376, 0.0
        %v1443 = vmax.f32 %v1379, 0.0
        %v1444 = vmax.f32 %v1381, 0.0
        %v1445 = vmax.f32 %v1384, 0.0
        %v1446 = vmax.f32 %v1386, 0.0
        %v1447 = vmax.f32 %v1389, 0.0
        %v1448 = vmax.f32 %v1391, 0.0
        %v1449 = vmax.f32 %v1394, 0.0
        %v1450 = vmax.f32 %v1396, 0.0
        %v1451 = vmax.f32 %v1399, 0.0
        %v1452 = vmax.f32 %v1401, 0.0
        %v1453 = vmax.f32 %v1404, 0.0
        %v1454 = vmax.f32 %v1406, 0.0
        %v1455 = vmax.f32 %v1409, 0.0
        %v1456 = vmax.f32 %v1411, 0.0
        %v1457 = vmax.f32 %v1414, 0.0
        %v1458 = vmax.f32 %v1416, 0.0
        %v1459 = vmax.f32 %v1419, 0.0
        %v1460 = vmax.f32 %v1421, 0.0
        %v1461 = vmax.f32 %v1424, 0.0
        %v1462 = vmax.f32 %v1426, 0.0
        %v1463 = vmax.f32 %v1429, 0.0
        %v1464 = vmax.f32 %v1431, 0.0
        %v1465 = vpack.c.bf16 %v1434, %v1433
        %v1466 = vpack.c.bf16 %v1436, %v1435
        %v1467 = vpack.c.bf16 %v1438, %v1437
        %v1468 = vpack.c.bf16 %v1440, %v1439
        %v1469 = vpack.c.bf16 %v1442, %v1441
        %v1470 = vpack.c.bf16 %v1444, %v1443
        %v1471 = vpack.c.bf16 %v1446, %v1445
        %v1472 = vpack.c.bf16 %v1448, %v1447
        %v1473 = vpack.c.bf16 %v1450, %v1449
        %v1474 = vpack.c.bf16 %v1452, %v1451
        %v1475 = vpack.c.bf16 %v1454, %v1453
        %v1476 = vpack.c.bf16 %v1456, %v1455
        %v1477 = vpack.c.bf16 %v1458, %v1457
        %v1478 = vpack.c.bf16 %v1460, %v1459
        %v1479 = vpack.c.bf16 %v1462, %v1461
        %v1480 = vpack.c.bf16 %v1464, %v1463
        %v1481 = vld [vmem:[%s5] sm:$0xff]
        %v1482 = vld [vmem:[%s5 + $0x8] sm:$0xff]
        %v1483 = vld [vmem:[%s5 + $0x10] sm:$0xff]
        %v1484 = vld [vmem:[%s5 + $0x18] sm:$0xff]
        %v1485 = vld [vmem:[%s5 + $0x20] sm:$0xff]
        %v1486 = vld [vmem:[%s5 + $0x28] sm:$0xff]
        %v1487 = vld [vmem:[%s5 + $0x30] sm:$0xff]
        %v1488 = vld [vmem:[%s5 + $0x38] sm:$0xff]
        %v1489 = vld [vmem:[%s5 + $0x40] sm:$0xff]
        %v1490 = vld [vmem:[%s5 + $0x48] sm:$0xff]
        %v1491 = vld [vmem:[%s5 + $0x50] sm:$0xff]
        %v1492 = vld [vmem:[%s5 + $0x58] sm:$0xff]
        %v1493 = vld [vmem:[%s5 + $0x60] sm:$0xff]
        %v1494 = vld [vmem:[%s5 + $0x68] sm:$0xff]
        %v1495 = vld [vmem:[%s5 + $0x70] sm:$0xff]
        %v1496 = vld [vmem:[%s5 + $0x78] sm:$0xff]
        %v1497 = vld [vmem:[%s6] sm:$0x3]
        %v1499 = vperm.slane %v1497, 0
        %v1500 = vperm.slane %v1497, 1
        %v1519 = vunpack.c.l.b16 %v1481
        %v1520 = vunpack.c.h.b16 %v1481
        %v1521 = vunpack.c.l.b16 %v1482
        %v1522 = vunpack.c.h.b16 %v1482
        %v1523 = vunpack.c.l.b16 %v1483
        %v1524 = vunpack.c.h.b16 %v1483
        %v1525 = vunpack.c.l.b16 %v1484
        %v1526 = vunpack.c.h.b16 %v1484
        %v1527 = vunpack.c.l.b16 %v1485
        %v1528 = vunpack.c.h.b16 %v1485
        %v1529 = vunpack.c.l.b16 %v1486
        %v1530 = vunpack.c.h.b16 %v1486
        %v1531 = vunpack.c.l.b16 %v1487
        %v1532 = vunpack.c.h.b16 %v1487
        %v1533 = vunpack.c.l.b16 %v1488
        %v1534 = vunpack.c.h.b16 %v1488
        %v1535 = vunpack.c.l.b16 %v1489
        %v1536 = vunpack.c.h.b16 %v1489
        %v1537 = vunpack.c.l.b16 %v1490
        %v1538 = vunpack.c.h.b16 %v1490
        %v1539 = vunpack.c.l.b16 %v1491
        %v1540 = vunpack.c.h.b16 %v1491
        %v1541 = vunpack.c.l.b16 %v1492
        %v1542 = vunpack.c.h.b16 %v1492
        %v1543 = vunpack.c.l.b16 %v1493
        %v1544 = vunpack.c.h.b16 %v1493
        %v1545 = vunpack.c.l.b16 %v1494
        %v1546 = vunpack.c.h.b16 %v1494
        %v1547 = vunpack.c.l.b16 %v1495
        %v1548 = vunpack.c.h.b16 %v1495
        %v1549 = vunpack.c.l.b16 %v1496
        %v1550 = vunpack.c.h.b16 %v1496
        %v1551 = vpack.c.b16 %v1521, %v1519
        %v1552 = vpack.c.b16 %v1522, %v1520
        %v1553 = vpack.c.b16 %v1525, %v1523
        %v1554 = vpack.c.b16 %v1526, %v1524
        %v1555 = vpack.c.b16 %v1529, %v1527
        %v1556 = vpack.c.b16 %v1530, %v1528
        %v1557 = vpack.c.b16 %v1533, %v1531
        %v1558 = vpack.c.b16 %v1534, %v1532
        %v1559 = vpack.c.b16 %v1537, %v1535
        %v1560 = vpack.c.b16 %v1538, %v1536
        %v1561 = vpack.c.b16 %v1541, %v1539
        %v1562 = vpack.c.b16 %v1542, %v1540
        %v1563 = vpack.c.b16 %v1545, %v1543
        %v1564 = vpack.c.b16 %v1546, %v1544
        %v1565 = vpack.c.b16 %v1549, %v1547
        %v1566 = vpack.c.b16 %v1550, %v1548
        %1583 = vmatpush.bf16.msra.mxu0 %v1565
        %1584 = vmatpush.bf16.msra.mxu0 %v1563
        %1585 = vmatpush.bf16.msra.mxu0 %v1561
        %1586 = vmatpush.bf16.msra.mxu0 %v1559
        %1587 = vmatpush.bf16.msra.mxu0 %v1557
        %1588 = vmatpush.bf16.msra.mxu0 %v1555
        %1589 = vmatpush.bf16.msra.mxu0 %v1553
        %1590 = vmatpush.bf16.msra.mxu0 %v1551
        %1591 = vmatmul.bf16.gmra.mxu0 %v1465
        %v1592 = vpop.f32.mrf.mxu0
        %v1593 = vadd.f32 %v1499, %v1592
        %v1594 = vpop.f32.mrf.mxu0
        %v1595 = vadd.f32 %v1499, %v1594
        %1596 = vmatmul.bf16.gmra.mxu0 %v1466
        %v1597 = vpop.f32.mrf.mxu0
        %v1598 = vadd.f32 %v1499, %v1597
        %v1599 = vpop.f32.mrf.mxu0
        %v1600 = vadd.f32 %v1499, %v1599
        %1601 = vmatmul.bf16.gmra.mxu0 %v1467
        %v1602 = vpop.f32.mrf.mxu0
        %v1603 = vadd.f32 %v1499, %v1602
        %v1604 = vpop.f32.mrf.mxu0
        %v1605 = vadd.f32 %v1499, %v1604
        %1606 = vmatmul.bf16.gmra.mxu0 %v1468
        %v1607 = vpop.f32.mrf.mxu0
        %v1608 = vadd.f32 %v1499, %v1607
        %v1609 = vpop.f32.mrf.mxu0
        %v1610 = vadd.f32 %v1499, %v1609
        %1611 = vmatmul.bf16.gmra.mxu0 %v1469
        %v1612 = vpop.f32.mrf.mxu0
        %v1613 = vadd.f32 %v1499, %v1612
        %v1614 = vpop.f32.mrf.mxu0
        %v1615 = vadd.f32 %v1499, %v1614
        %1616 = vmatmul.bf16.gmra.mxu0 %v1470
        %v1617 = vpop.f32.mrf.mxu0
        %v1618 = vadd.f32 %v1499, %v1617
        %v1619 = vpop.f32.mrf.mxu0
        %v1620 = vadd.f32 %v1499, %v1619
        %1621 = vmatmul.bf16.gmra.mxu0 %v1471
        %v1622 = vpop.f32.mrf.mxu0
        %v1623 = vadd.f32 %v1499, %v1622
        %v1624 = vpop.f32.mrf.mxu0
        %v1625 = vadd.f32 %v1499, %v1624
        %1626 = vmatmul.bf16.gmra.mxu0 %v1472
        %v1627 = vpop.f32.mrf.mxu0
        %v1628 = vadd.f32 %v1499, %v1627
        %v1629 = vpop.f32.mrf.mxu0
        %v1630 = vadd.f32 %v1499, %v1629
        %1631 = vmatmul.bf16.gmra.mxu0 %v1473
        %v1632 = vpop.f32.mrf.mxu0
        %v1633 = vadd.f32 %v1499, %v1632
        %v1634 = vpop.f32.mrf.mxu0
        %v1635 = vadd.f32 %v1499, %v1634
        %1636 = vmatmul.bf16.gmra.mxu0 %v1474
        %v1637 = vpop.f32.mrf.mxu0
        %v1638 = vadd.f32 %v1499, %v1637
        %v1639 = vpop.f32.mrf.mxu0
        %v1640 = vadd.f32 %v1499, %v1639
        %1641 = vmatmul.bf16.gmra.mxu0 %v1475
        %v1642 = vpop.f32.mrf.mxu0
        %v1643 = vadd.f32 %v1499, %v1642
        %v1644 = vpop.f32.mrf.mxu0
        %v1645 = vadd.f32 %v1499, %v1644
        %1646 = vmatmul.bf16.gmra.mxu0 %v1476
        %v1647 = vpop.f32.mrf.mxu0
        %v1648 = vadd.f32 %v1499, %v1647
        %v1649 = vpop.f32.mrf.mxu0
        %v1650 = vadd.f32 %v1499, %v1649
        %1651 = vmatmul.bf16.gmra.mxu0 %v1477
        %v1652 = vpop.f32.mrf.mxu0
        %v1653 = vadd.f32 %v1499, %v1652
        %v1654 = vpop.f32.mrf.mxu0
        %v1655 = vadd.f32 %v1499, %v1654
        %1656 = vmatmul.bf16.gmra.mxu0 %v1478
        %v1657 = vpop.f32.mrf.mxu0
        %v1658 = vadd.f32 %v1499, %v1657
        %v1659 = vpop.f32.mrf.mxu0
        %v1660 = vadd.f32 %v1499, %v1659
        %1661 = vmatmul.bf16.gmra.mxu0 %v1479
        %v1662 = vpop.f32.mrf.mxu0
        %v1663 = vadd.f32 %v1499, %v1662
        %v1664 = vpop.f32.mrf.mxu0
        %v1665 = vadd.f32 %v1499, %v1664
        %1666 = vmatmul.bf16.gmra.mxu0 %v1480
        %v1667 = vpop.f32.mrf.mxu0
        %v1668 = vadd.f32 %v1499, %v1667
        %v1669 = vpop.f32.mrf.mxu0
        %v1670 = vadd.f32 %v1499, %v1669
        %1671 = vdwg.mxu0
        %1672 = vmatpush.bf16.msra.mxu0 %v1566
        %1673 = vmatpush.bf16.msra.mxu0 %v1564
        %1674 = vmatpush.bf16.msra.mxu0 %v1562
        %1675 = vmatpush.bf16.msra.mxu0 %v1560
        %1676 = vmatpush.bf16.msra.mxu0 %v1558
        %1677 = vmatpush.bf16.msra.mxu0 %v1556
        %1678 = vmatpush.bf16.msra.mxu0 %v1554
        %1679 = vmatpush.bf16.msra.mxu0 %v1552
        %1680 = vmatmul.bf16.gmra.mxu0 %v1465
        %v1681 = vpop.f32.mrf.mxu0
        %v1682 = vadd.f32 %v1500, %v1681
        %v1683 = vpop.f32.mrf.mxu0
        %v1684 = vadd.f32 %v1500, %v1683
        %1685 = vmatmul.bf16.gmra.mxu0 %v1466
        %v1686 = vpop.f32.mrf.mxu0
        %v1687 = vadd.f32 %v1500, %v1686
        %v1688 = vpop.f32.mrf.mxu0
        %v1689 = vadd.f32 %v1500, %v1688
        %1690 = vmatmul.bf16.gmra.mxu0 %v1467
        %v1691 = vpop.f32.mrf.mxu0
        %v1692 = vadd.f32 %v1500, %v1691
        %v1693 = vpop.f32.mrf.mxu0
        %v1694 = vadd.f32 %v1500, %v1693
        %1695 = vmatmul.bf16.gmra.mxu0 %v1468
        %v1696 = vpop.f32.mrf.mxu0
        %v1697 = vadd.f32 %v1500, %v1696
        %v1698 = vpop.f32.mrf.mxu0
        %v1699 = vadd.f32 %v1500, %v1698
        %1700 = vmatmul.bf16.gmra.mxu0 %v1469
        %v1701 = vpop.f32.mrf.mxu0
        %v1702 = vadd.f32 %v1500, %v1701
        %v1703 = vpop.f32.mrf.mxu0
        %v1704 = vadd.f32 %v1500, %v1703
        %1705 = vmatmul.bf16.gmra.mxu0 %v1470
        %v1706 = vpop.f32.mrf.mxu0
        %v1707 = vadd.f32 %v1500, %v1706
        %v1708 = vpop.f32.mrf.mxu0
        %v1709 = vadd.f32 %v1500, %v1708
        %1710 = vmatmul.bf16.gmra.mxu0 %v1471
        %v1711 = vpop.f32.mrf.mxu0
        %v1712 = vadd.f32 %v1500, %v1711
        %v1713 = vpop.f32.mrf.mxu0
        %v1714 = vadd.f32 %v1500, %v1713
        %1715 = vmatmul.bf16.gmra.mxu0 %v1472
        %v1716 = vpop.f32.mrf.mxu0
        %v1717 = vadd.f32 %v1500, %v1716
        %v1718 = vpop.f32.mrf.mxu0
        %v1719 = vadd.f32 %v1500, %v1718
        %1720 = vmatmul.bf16.gmra.mxu0 %v1473
        %v1721 = vpop.f32.mrf.mxu0
        %v1722 = vadd.f32 %v1500, %v1721
        %v1723 = vpop.f32.mrf.mxu0
        %v1724 = vadd.f32 %v1500, %v1723
        %1725 = vmatmul.bf16.gmra.mxu0 %v1474
        %v1726 = vpop.f32.mrf.mxu0
        %v1727 = vadd.f32 %v1500, %v1726
        %v1728 = vpop.f32.mrf.mxu0
        %v1729 = vadd.f32 %v1500, %v1728
        %1730 = vmatmul.bf16.gmra.mxu0 %v1475
        %v1731 = vpop.f32.mrf.mxu0
        %v1732 = vadd.f32 %v1500, %v1731
        %v1733 = vpop.f32.mrf.mxu0
        %v1734 = vadd.f32 %v1500, %v1733
        %1735 = vmatmul.bf16.gmra.mxu0 %v1476
        %v1736 = vpop.f32.mrf.mxu0
        %v1737 = vadd.f32 %v1500, %v1736
        %v1738 = vpop.f32.mrf.mxu0
        %v1739 = vadd.f32 %v1500, %v1738
        %1740 = vmatmul.bf16.gmra.mxu0 %v1477
        %v1741 = vpop.f32.mrf.mxu0
        %v1742 = vadd.f32 %v1500, %v1741
        %v1743 = vpop.f32.mrf.mxu0
        %v1744 = vadd.f32 %v1500, %v1743
        %1745 = vmatmul.bf16.gmra.mxu0 %v1478
        %v1746 = vpop.f32.mrf.mxu0
        %v1747 = vadd.f32 %v1500, %v1746
        %v1748 = vpop.f32.mrf.mxu0
        %v1749 = vadd.f32 %v1500, %v1748
        %1750 = vmatmul.bf16.gmra.mxu0 %v1479
        %v1751 = vpop.f32.mrf.mxu0
        %v1752 = vadd.f32 %v1500, %v1751
        %v1753 = vpop.f32.mrf.mxu0
        %v1754 = vadd.f32 %v1500, %v1753
        %1755 = vmatmul.bf16.gmra.mxu0 %v1480
        %v1756 = vpop.f32.mrf.mxu0
        %v1757 = vadd.f32 %v1500, %v1756
        %v1758 = vpop.f32.mrf.mxu0
        %v1759 = vadd.f32 %v1500, %v1758
        %1760 = vdwg.mxu0
        %v1761 = vsub.f32 %v320, %v1593
        %v1762 = vsub.f32 %v321, %v1595
        %v1763 = vsub.f32 %v322, %v1598
        %v1764 = vsub.f32 %v323, %v1600
        %v1765 = vsub.f32 %v324, %v1603
        %v1766 = vsub.f32 %v325, %v1605
        %v1767 = vsub.f32 %v326, %v1608
        %v1768 = vsub.f32 %v327, %v1610
        %v1769 = vsub.f32 %v328, %v1613
        %v1770 = vsub.f32 %v329, %v1615
        %v1771 = vsub.f32 %v330, %v1618
        %v1772 = vsub.f32 %v331, %v1620
        %v1773 = vsub.f32 %v332, %v1623
        %v1774 = vsub.f32 %v333, %v1625
        %v1775 = vsub.f32 %v334, %v1628
        %v1776 = vsub.f32 %v335, %v1630
        %v1777 = vsub.f32 %v336, %v1633
        %v1778 = vsub.f32 %v337, %v1635
        %v1779 = vsub.f32 %v338, %v1638
        %v1780 = vsub.f32 %v339, %v1640
        %v1781 = vsub.f32 %v340, %v1643
        %v1782 = vsub.f32 %v341, %v1645
        %v1783 = vsub.f32 %v342, %v1648
        %v1784 = vsub.f32 %v343, %v1650
        %v1785 = vsub.f32 %v344, %v1653
        %v1786 = vsub.f32 %v345, %v1655
        %v1787 = vsub.f32 %v346, %v1658
        %v1788 = vsub.f32 %v347, %v1660
        %v1789 = vsub.f32 %v348, %v1663
        %v1790 = vsub.f32 %v349, %v1665
        %v1791 = vsub.f32 %v350, %v1668
        %v1792 = vsub.f32 %v351, %v1670
        %v1793 = vsub.f32 0.0, %v1682
        %v1794 = vsub.f32 0.0, %v1684
        %v1795 = vsub.f32 0.0, %v1687
        %v1796 = vsub.f32 0.0, %v1689
        %v1797 = vsub.f32 0.0, %v1692
        %v1798 = vsub.f32 0.0, %v1694
        %v1799 = vsub.f32 0.0, %v1697
        %v1800 = vsub.f32 0.0, %v1699
        %v1801 = vsub.f32 0.0, %v1702
        %v1802 = vsub.f32 0.0, %v1704
        %v1803 = vsub.f32 0.0, %v1707
        %v1804 = vsub.f32 0.0, %v1709
        %v1805 = vsub.f32 0.0, %v1712
        %v1806 = vsub.f32 0.0, %v1714
        %v1807 = vsub.f32 0.0, %v1717
        %v1808 = vsub.f32 0.0, %v1719
        %v1809 = vsub.f32 0.0, %v1722
        %v1810 = vsub.f32 0.0, %v1724
        %v1811 = vsub.f32 0.0, %v1727
        %v1812 = vsub.f32 0.0, %v1729
        %v1813 = vsub.f32 0.0, %v1732
        %v1814 = vsub.f32 0.0, %v1734
        %v1815 = vsub.f32 0.0, %v1737
        %v1816 = vsub.f32 0.0, %v1739
        %v1817 = vsub.f32 0.0, %v1742
        %v1818 = vsub.f32 0.0, %v1744
        %v1819 = vsub.f32 0.0, %v1747
        %v1820 = vsub.f32 0.0, %v1749
        %v1821 = vsub.f32 0.0, %v1752
        %v1822 = vsub.f32 0.0, %v1754
        %v1823 = vsub.f32 0.0, %v1757
        %v1824 = vsub.f32 0.0, %v1759
        %v1825 = vmul.f32 %v1793, 1.442695
        %v1826 = vpow.pop %v1825
        %v1827 = vmul.f32 %v1794, 1.442695
        %v1828 = vpow.pop %v1827
        %v1829 = vmul.f32 %v1795, 1.442695
        %v1830 = vpow.pop %v1829
        %v1831 = vmul.f32 %v1796, 1.442695
        %v1832 = vpow.pop %v1831
        %v1833 = vmul.f32 %v1797, 1.442695
        %v1834 = vpow.pop %v1833
        %v1835 = vmul.f32 %v1798, 1.442695
        %v1836 = vpow.pop %v1835
        %v1837 = vmul.f32 %v1799, 1.442695
        %v1838 = vpow.pop %v1837
        %v1839 = vmul.f32 %v1800, 1.442695
        %v1840 = vpow.pop %v1839
        %v1841 = vmul.f32 %v1801, 1.442695
        %v1842 = vpow.pop %v1841
        %v1843 = vmul.f32 %v1802, 1.442695
        %v1844 = vpow.pop %v1843
        %v1845 = vmul.f32 %v1803, 1.442695
        %v1846 = vpow.pop %v1845
        %v1847 = vmul.f32 %v1804, 1.442695
        %v1848 = vpow.pop %v1847
        %v1849 = vmul.f32 %v1805, 1.442695
        %v1850 = vpow.pop %v1849
        %v1851 = vmul.f32 %v1806, 1.442695
        %v1852 = vpow.pop %v1851
        %v1853 = vmul.f32 %v1807, 1.442695
        %v1854 = vpow.pop %v1853
        %v1855 = vmul.f32 %v1808, 1.442695
        %v1856 = vpow.pop %v1855
        %v1857 = vmul.f32 %v1809, 1.442695
        %v1858 = vpow.pop %v1857
        %v1859 = vmul.f32 %v1810, 1.442695
        %v1860 = vpow.pop %v1859
        %v1861 = vmul.f32 %v1811, 1.442695
        %v1862 = vpow.pop %v1861
        %v1863 = vmul.f32 %v1812, 1.442695
        %v1864 = vpow.pop %v1863
        %v1865 = vmul.f32 %v1813, 1.442695
        %v1866 = vpow.pop %v1865
        %v1867 = vmul.f32 %v1814, 1.442695
        %v1868 = vpow.pop %v1867
        %v1869 = vmul.f32 %v1815, 1.442695
        %v1870 = vpow.pop %v1869
        %v1871 = vmul.f32 %v1816, 1.442695
        %v1872 = vpow.pop %v1871
        %v1873 = vmul.f32 %v1817, 1.442695
        %v1874 = vpow.pop %v1873
        %v1875 = vmul.f32 %v1818, 1.442695
        %v1876 = vpow.pop %v1875
        %v1877 = vmul.f32 %v1819, 1.442695
        %v1878 = vpow.pop %v1877
        %v1879 = vmul.f32 %v1820, 1.442695
        %v1880 = vpow.pop %v1879
        %v1881 = vmul.f32 %v1821, 1.442695
        %v1882 = vpow.pop %v1881
        %v1883 = vmul.f32 %v1822, 1.442695
        %v1884 = vpow.pop %v1883
        %v1885 = vmul.f32 %v1823, 1.442695
        %v1886 = vpow.pop %v1885
        %v1887 = vmul.f32 %v1824, 1.442695
        %v1888 = vpow.pop %v1887
        %v1889 = vmul.f32 %v1761, %v1826
        %v1890 = vmul.f32 %v1762, %v1828
        %v1891 = vmul.f32 %v1763, %v1830
        %v1892 = vmul.f32 %v1764, %v1832
        %v1893 = vmul.f32 %v1765, %v1834
        %v1894 = vmul.f32 %v1766, %v1836
        %v1895 = vmul.f32 %v1767, %v1838
        %v1896 = vmul.f32 %v1768, %v1840
        %v1897 = vmul.f32 %v1769, %v1842
        %v1898 = vmul.f32 %v1770, %v1844
        %v1899 = vmul.f32 %v1771, %v1846
        %v1900 = vmul.f32 %v1772, %v1848
        %v1901 = vmul.f32 %v1773, %v1850
        %v1902 = vmul.f32 %v1774, %v1852
        %v1903 = vmul.f32 %v1775, %v1854
        %v1904 = vmul.f32 %v1776, %v1856
        %v1905 = vmul.f32 %v1777, %v1858
        %v1906 = vmul.f32 %v1778, %v1860
        %v1907 = vmul.f32 %v1779, %v1862
        %v1908 = vmul.f32 %v1780, %v1864
        %v1909 = vmul.f32 %v1781, %v1866
        %v1910 = vmul.f32 %v1782, %v1868
        %v1911 = vmul.f32 %v1783, %v1870
        %v1912 = vmul.f32 %v1784, %v1872
        %v1913 = vmul.f32 %v1785, %v1874
        %v1914 = vmul.f32 %v1786, %v1876
        %v1915 = vmul.f32 %v1787, %v1878
        %v1916 = vmul.f32 %v1788, %v1880
        %v1917 = vmul.f32 %v1789, %v1882
        %v1918 = vmul.f32 %v1790, %v1884
        %v1919 = vmul.f32 %v1791, %v1886
        %v1920 = vmul.f32 %v1792, %v1888
        %vm1921 = vcmask 31744
        %1922 = vst.msk [vmem:[%s318] sm:$0xff] %vm1921, %v1889
        %1923 = vst.msk [vmem:[%s318 + $0x8] sm:$0xff] %vm1921, %v1890
        %1924 = vst.msk [vmem:[%s318 + $0x10] sm:$0xff] %vm1921, %v1891
        %1925 = vst.msk [vmem:[%s318 + $0x18] sm:$0xff] %vm1921, %v1892
        %1926 = vst.msk [vmem:[%s318 + $0x20] sm:$0xff] %vm1921, %v1893
        %1927 = vst.msk [vmem:[%s318 + $0x28] sm:$0xff] %vm1921, %v1894
        %1928 = vst.msk [vmem:[%s318 + $0x30] sm:$0xff] %vm1921, %v1895
        %1929 = vst.msk [vmem:[%s318 + $0x38] sm:$0xff] %vm1921, %v1896
        %1930 = vst.msk [vmem:[%s318 + $0x40] sm:$0xff] %vm1921, %v1897
        %1931 = vst.msk [vmem:[%s318 + $0x48] sm:$0xff] %vm1921, %v1898
        %1932 = vst.msk [vmem:[%s318 + $0x50] sm:$0xff] %vm1921, %v1899
        %1933 = vst.msk [vmem:[%s318 + $0x58] sm:$0xff] %vm1921, %v1900
        %1934 = vst.msk [vmem:[%s318 + $0x60] sm:$0xff] %vm1921, %v1901
        %1935 = vst.msk [vmem:[%s318 + $0x68] sm:$0xff] %vm1921, %v1902
        %1936 = vst.msk [vmem:[%s318 + $0x70] sm:$0xff] %vm1921, %v1903
        %1937 = vst.msk [vmem:[%s318 + $0x78] sm:$0xff] %vm1921, %v1904
        %1938 = vst.msk [vmem:[%s318 + $0x80] sm:$0xff] %vm1921, %v1905
        %1939 = vst.msk [vmem:[%s318 + $0x88] sm:$0xff] %vm1921, %v1906
        %1940 = vst.msk [vmem:[%s318 + $0x90] sm:$0xff] %vm1921, %v1907
        %1941 = vst.msk [vmem:[%s318 + $0x98] sm:$0xff] %vm1921, %v1908
        %1942 = vst.msk [vmem:[%s318 + $0xa0] sm:$0xff] %vm1921, %v1909
        %1943 = vst.msk [vmem:[%s318 + $0xa8] sm:$0xff] %vm1921, %v1910
        %1944 = vst.msk [vmem:[%s318 + $0xb0] sm:$0xff] %vm1921, %v1911
        %1945 = vst.msk [vmem:[%s318 + $0xb8] sm:$0xff] %vm1921, %v1912
        %1946 = vst.msk [vmem:[%s318 + $0xc0] sm:$0xff] %vm1921, %v1913
        %1947 = vst.msk [vmem:[%s318 + $0xc8] sm:$0xff] %vm1921, %v1914
        %1948 = vst.msk [vmem:[%s318 + $0xd0] sm:$0xff] %vm1921, %v1915
        %1949 = vst.msk [vmem:[%s318 + $0xd8] sm:$0xff] %vm1921, %v1916
        %1950 = vst.msk [vmem:[%s318 + $0xe0] sm:$0xff] %vm1921, %v1917
        %1951 = vst.msk [vmem:[%s318 + $0xe8] sm:$0xff] %vm1921, %v1918
        %1952 = vst.msk [vmem:[%s318 + $0xf0] sm:$0xff] %vm1921, %v1919
        %1953 = vst.msk [vmem:[%s318 + $0xf8] sm:$0xff] %vm1921, %v1920
        %1954 = vmatpush.xpose.msra.mxu0 %v1719
        %1955 = vmatpush.xpose.msra.mxu0 %v1717
        %1956 = vmatpush.xpose.msra.mxu0 %v1714
        %1957 = vmatpush.xpose.msra.mxu0 %v1712
        %1958 = vmatpush.xpose.msra.mxu0 %v1709
        %1959 = vmatpush.xpose.msra.mxu0 %v1707
        %1960 = vmatpush.xpose.msra.mxu0 %v1704
        %1961 = vmatpush.xpose.msra.mxu0 %v1702
        %1962 = vmatpush.xpose.msra.mxu0 %v1699
        %1963 = vmatpush.xpose.msra.mxu0 %v1697
        %1964 = vmatpush.xpose.msra.mxu0 %v1694
        %1965 = vmatpush.xpose.msra.mxu0 %v1692
        %1966 = vmatpush.xpose.msra.mxu0 %v1689
        %1967 = vmatpush.xpose.msra.mxu0 %v1687
        %1968 = vmatpush.xpose.msra.mxu0 %v1684
        %1969 = vmatpush.xpose.msra.mxu0 %v1682
        %1970 = vmatmul.f32.gmra.mxu0 1.0
        %v1971 = vpop.f32.mrf.mxu0
        %v1972 = vadd.f32 0.0, %v1971
        %1973 = vdwg.mxu0
        %1974 = vmatpush.xpose.msra.mxu0 %v1759
        %1975 = vmatpush.xpose.msra.mxu0 %v1757
        %1976 = vmatpush.xpose.msra.mxu0 %v1754
        %1977 = vmatpush.xpose.msra.mxu0 %v1752
        %1978 = vmatpush.xpose.msra.mxu0 %v1749
        %1979 = vmatpush.xpose.msra.mxu0 %v1747
        %1980 = vmatpush.xpose.msra.mxu0 %v1744
        %1981 = vmatpush.xpose.msra.mxu0 %v1742
        %1982 = vmatpush.xpose.msra.mxu0 %v1739
        %1983 = vmatpush.xpose.msra.mxu0 %v1737
        %1984 = vmatpush.xpose.msra.mxu0 %v1734
        %1985 = vmatpush.xpose.msra.mxu0 %v1732
        %1986 = vmatpush.xpose.msra.mxu0 %v1729
        %1987 = vmatpush.xpose.msra.mxu0 %v1727
        %1988 = vmatpush.xpose.msra.mxu0 %v1724
        %1989 = vmatpush.xpose.msra.mxu0 %v1722
        %1990 = vmatmul.f32.gmra.mxu0 1.0
        %v1991 = vpop.f32.mrf.mxu0
        %v1992 = vadd.f32 0.0, %v1991
        %1993 = vdwg.mxu0
        %v1994 = vsub.f32 0.0, %v1972
        %v1995 = vsub.f32 0.0, %v1992
        %v1998 = vrot.slane %v1995, 7
        %vm1999 = vcmask 1040384
        %v2000 = vsel %vm1999, %v1994, %v1998
        %v2002 = vlaneseq
        %vm2003 = vcmp.ge.s32.totalorder %v2002, 0
        %vm2004 = vcmp.lt.s32.totalorder %v2002, 256
        %vm2005 = vmand %vm2003, %vm2004
        %2006 = vst.msk [vmem:[%s307] sm:$0x3] %vm2005, %v2000
        %s2007 = smul.u32 32, %s23
        %p2008 = scmp.lt.s32.totalorder %s2007, 63
        %s2009 = scalar_select %p2008, %s2007, 63
        %s2010 = smul.addr %s2009, 8
        %s2011 = scalar_lea.vmem %s7, %s2010
        %s2012 = sand.u32 %s209, 1
        %s2013 = scalar_lea.sflag [#allocation3], %s2012
        %s2014 = sand.u32 %s209, 1
        %s2015 = smul.addr %s2014, 2
        %s2016 = scalar_lea.vmem [#allocation2], %s2015
        // Predicated region
        $region49: #{tpu_custom_call.1} parent=47 // pred_check
          %p2017 = pneg %p193
        $region50: #{tpu_custom_call.1} parent=47 // pred_check_branch
          %2019 = sbr.rel (%p2017) target = $region52
        $region51: #{tpu_custom_call.1} parent=47 // pred_region
          %s2020 = smul.u32 32, %s23
        $region52: #{tpu_custom_call.1} parent=47 // pred_fallthru
          _
        // Predicated region
        $region53: #{tpu_custom_call.1} parent=47 // pred_check
          %p2021 = pneg %p219
        $region54: #{tpu_custom_call.1} parent=47 // pred_check_branch
          %2023 = sbr.rel (%p2021) target = $region56
        $region55: #{tpu_custom_call.1} parent=47 // pred_region
          %2025 = vsyncadd %s2013, 0
          %s2026 = smul.addr %s23, 2
          %s2027 = scalar_lea.hbm %s8, %s2026
          %s2029 = sshll.u32 %s2016, 4
          %s2030 = int_to_ptr.vmem [resolvable:$true] %s2029
          %s2031 = sshll.u32 %s2027, 4
          %s2032 = int_to_ptr.hbm [resolvable:$true] %s2031
          %2034 = dma.vmem_to_hbm [thread:$0]  %s2030, 32, %s2032, %s2013
        $region56: #{tpu_custom_call.1} parent=47 // pred_fallthru
          _
      $region48: #{tpu_custom_call.1} parent=5 // pred_fallthru
        _
      %p2035 = scmp.le.s32.totalorder 2, %s18
      // Predicated region
      $region57: #{tpu_custom_call.1} parent=5 // pred_check
        %p2036 = pneg %p2035
      $region58: #{tpu_custom_call.1} parent=5 // pred_check_branch
        %2038 = sbr.rel (%p2036) target = $region60
      $region59: #{tpu_custom_call.1} parent=5 // pred_region
        %s2039 = ssub.s32 %s18, 2
        // Predicated region
        $region61: #{tpu_custom_call.1} parent=59 // pred_check
          %p2040 = pneg %p199
        $region62: #{tpu_custom_call.1} parent=59 // pred_check_branch
          %2042 = sbr.rel (%p2040) target = $region64
        $region63: #{tpu_custom_call.1} parent=59 // pred_region
          %s2043 = smul.u32 32, %s24
          %p2044 = scmp.lt.s32.totalorder %s2043, 63
          %s2045 = scalar_select %p2044, %s2043, 63
          %s2046 = smul.addr %s2045, 8
          %s2047 = scalar_lea.vmem %s7, %s2046
        $region64: #{tpu_custom_call.1} parent=59 // pred_fallthru
          _
        // Predicated region
        $region65: #{tpu_custom_call.1} parent=59 // pred_check
          %p2048 = pneg %p225
        $region66: #{tpu_custom_call.1} parent=59 // pred_check_branch
          %2050 = sbr.rel (%p2048) target = $region68
        $region67: #{tpu_custom_call.1} parent=59 // pred_region
          %s2051 = sand.u32 %s210, 1
          %s2052 = scalar_lea.sflag [#allocation3], %s2051
          %s2053 = sand.u32 %s210, 1
          %s2054 = smul.addr %s2053, 2
          %s2055 = scalar_lea.vmem [#allocation2], %s2054
          %2057 = dma.done %s2052, 32
        $region68: #{tpu_custom_call.1} parent=59 // pred_fallthru
          _
      $region60: #{tpu_custom_call.1} parent=5 // pred_fallthru
        _
    $region6: #{tpu_custom_call.1} parent=1 // loop_footer
      %s22 = sadd.s32 1, %s18
    $region7: #{tpu_custom_call.1} parent=1 // loop_footer_branch
      %17 = sbr.rel target = $region3
    $region8: #{tpu_custom_call.1} parent=1 // loop_exit
      _
    %2058 = vsyncpa [#allocation3], 1
    %s2059 = scalar_lea.sflag [#allocation3], 1
    %2060 = vsyncpa %s2059, 1

</llo_original>
